<compile_context>
chip_gen: v7x
topology: tpu7x:2x2x1
jax: 0.10.0
libtpu: 0.0.40
codegen_flags: <defaults>
</compile_context>

<pallas_src>
import functools

import jax
import jax.numpy as jnp
from jax.experimental import pallas as pl
from jax.experimental.pallas import tpu as pltpu


def _batch_tile(B):
    # 8 keeps sublanes full at realistic batch; 1 still exercises the batch grid
    # (pipelining + megacore split) at tiny demo batch sizes.
    return 8 if B % 8 == 0 else 1


# ----------------------------------------------------------------------------
# Kernel 1: one bidirectional LSTM layer (per batch tile).
# ----------------------------------------------------------------------------
def _bilstm_kernel(x_ref, wih_ref, whh_ref, b_ref, out_ref, gx_ref):
    Bt, T, Din = x_ref.shape
    H8 = wih_ref.shape[1]          # 8H  (fwd 4H gates ++ bwd 4H gates)
    H4 = H8 // 2                   # 4H
    H = H4 // 4
    H3 = 3 * H

    # Hoisted, fused input projection: one (Bt*T, Din)x(Din, 8H) MXU matmul for both
    # directions; bias folded; parked in VMEM scratch (not held live in vregs across
    # the whole unrolled recurrence).
    x2 = x_ref[...].reshape(Bt * T, Din)
    gx_ref[...] = (jnp.dot(x2, wih_ref[...], preferred_element_type=jnp.float32)
                   + b_ref[...]).reshape(Bt, T, H8)

    whh = whh_ref[...]             # (2H, 8H) block-diagonal [fwd | bwd], gates (i,f,o,g)

    def halfcell(gates, c_prev):
        # gates: (Bt, 4H) in (i, f, o, g) order -> one sigmoid over 3H, one tanh over H.
        sig = jax.nn.sigmoid(gates[:, 0:H3])
        g = jnp.tanh(gates[:, H3:H4])
        c = sig[:, H:2 * H] * c_prev + sig[:, 0:H] * g
        h = sig[:, 2 * H:H3] * jnp.tanh(c)
        return h, c

    zeros = jnp.zeros((Bt, H), jnp.float32)
    h_f, c_f, h_b, c_b = zeros, zeros, zeros, zeros
    hs_f, hs_b = [], []

    # Static unrolled time loop (T is small here).
    # TODO(synk): for large T switch to lax.fori_loop(..., unroll=4..8) writing into a
    #             VMEM scratch to bound code size / vreg live ranges.
    for t in range(T):
        tb = T - 1 - t
        hc = jnp.concatenate([h_f, h_b], axis=-1)                     # (Bt, 2H)
        grec = jnp.dot(hc, whh, preferred_element_type=jnp.float32)   # ONE MXU op / step
        gates_f = grec[:, 0:H4] + gx_ref[:, t, 0:H4]
        gates_b = grec[:, H4:H8] + gx_ref[:, tb, H4:H8]
        h_f, c_f = halfcell(gates_f, c_f)
        h_b, c_b = halfcell(gates_b, c_b)
        hs_f.append(h_f)
        hs_b.append(h_b)

    # Single lane-dense (Bt, T, 2H) store instead of 2T masked H-wide partial stores.
    out_f = jnp.stack(hs_f, axis=1)             # (Bt, T, H) forward time order
    out_b = jnp.stack(hs_b[::-1], axis=1)       # (Bt, T, H) back to forward time order
    out_ref[...] = jnp.concatenate([out_f, out_b], axis=-1)


def bilstm_layer(x, lp):
    """x: (B, T, Din) f32 -> (B, T, 2H), forward ++ backward (PyTorch convention)."""
    B, T, Din = x.shape
    wih, whh, b = lp["w_ih"], lp["w_hh"], lp["b"]
    H8 = wih.shape[1]
    H = H8 // 8
    bt = _batch_tile(B)
    grid = (B // bt,)

    flops = 2 * B * T * Din * H8 + 2 * B * T * (2 * H) * H8 + 16 * B * T * H
    transc = 10 * B * T * H
    byts = 4 * (B * T * Din + B * T * 2 * H + Din * H8 + 2 * H * H8 + H8)

    return pl.pallas_call(
        _bilstm_kernel,
        out_shape=jax.ShapeDtypeStruct((B, T, 2 * H), jnp.float32),
        grid=grid,
        in_specs=[
            pl.BlockSpec((bt, T, Din), lambda i: (i, 0, 0)),
            pl.BlockSpec((Din, H8), lambda i: (0, 0)),
            pl.BlockSpec((2 * H, H8), lambda i: (0, 0)),
            pl.BlockSpec((1, H8), lambda i: (0, 0)),
        ],
        out_specs=pl.BlockSpec((bt, T, 2 * H), lambda i: (i, 0, 0)),
        scratch_shapes=[pltpu.VMEM((bt, T, H8), jnp.float32)],
        compiler_params=pltpu.CompilerParams(
            dimension_semantics=("parallel",),
            vmem_limit_bytes=32 * 1024 * 1024,
        ),
        cost_estimate=pl.CostEstimate(flops=flops, transcendentals=transc,
                                      bytes_accessed=byts),
    )(x, wih, whh, b)


# ----------------------------------------------------------------------------
# Kernel 2: last-query multi-head attention fused with residual + LayerNorm +
# fc1 + ReLU + fc2 (per batch tile, no per-batch / per-head Python loops).
# ----------------------------------------------------------------------------
def _attn_head_kernel(x_ref, wq_ref, wkv_ref, wo_ref, bq_ref, bkv_ref, bo_ref,
                      maskT_ref, gamma_ref, beta_ref, w1_ref, b1_ref, w2_ref, b2_ref,
                      out_ref, *, num_heads):
    Bt, T, D = x_ref.shape
    nh = num_heads
    hd = D // nh
    scale = 1.0 / (hd ** 0.5)

    x = x_ref[...]
    x2 = x.reshape(Bt * T, D)

    # Fused K/V projection: one (Bt*T, D) x (D, 2D) MXU matmul.
    kv = jnp.dot(x2, wkv_ref[...], preferred_element_type=jnp.float32) + bkv_ref[...]
    k3 = kv[:, 0:D].reshape(Bt, T, D)
    v3 = kv[:, D:2 * D].reshape(Bt, T, D)

    # Only the last timestep is consumed downstream -> project Q for t = T-1 only.
    x_last = x[:, T - 1, :]                                    # (Bt, D)
    q = jnp.dot(x_last, wq_ref[...], preferred_element_type=jnp.float32) + bq_ref[...]

    # All heads at once via a head-selector matrix maskT (nh, D), maskT[h,d]=1 iff
    # lane d belongs to head h:  scores[b,t,h] = sum_d K[b,t,d] * (q[b,d]*maskT[h,d]).
    maskT = maskT_ref[...]                                     # (nh, D)
    q_heads = q[:, None, :] * maskT[None, :, :]                # (Bt, nh, D)
    s = jnp.einsum('btd,bhd->bth', k3, q_heads,
                   preferred_element_type=jnp.float32) * scale  # (Bt, T, nh)
    s = s - jnp.max(s, axis=1, keepdims=True)
    e = jnp.exp(s)
    attn = e / jnp.sum(e, axis=1, keepdims=True)               # exact softmax over T

    # Broadcast head weights back to lanes, weight V, reduce over T (VPU + reduce).
    attn_full = jnp.dot(attn.reshape(Bt * T, nh), maskT,
                        preferred_element_type=jnp.float32).reshape(Bt, T, D)
    ctx = jnp.sum(attn_full * v3, axis=1)                      # (Bt, D) = concat of heads
    att_out = jnp.dot(ctx, wo_ref[...], preferred_element_type=jnp.float32) + bo_ref[...]

    # Residual + LayerNorm (per position -> last-timestep-only is exact) + MLP head.
    s2 = x_last + att_out
    mean = jnp.mean(s2, axis=-1, keepdims=True)
    var = jnp.mean((s2 - mean) ** 2, axis=-1, keepdims=True)
    ln = (s2 - mean) * jax.lax.rsqrt(var + 1e-5) * gamma_ref[...] + beta_ref[...]
    h1 = jnp.maximum(
        jnp.dot(ln, w1_ref[...], preferred_element_type=jnp.float32) + b1_ref[...], 0.0)
    y = jnp.dot(h1, w2_ref[...], preferred_element_type=jnp.float32) + b2_ref[...]
    out_ref[...] = y.reshape(Bt, 1, y.shape[-1])


def attention_and_head(x, ap):
    """x: (B, T, D) f32 -> (B, output_size)."""
    B, T, D = x.shape
    H2 = ap["fc1_w"].shape[1]
    O = ap["fc2_w"].shape[1]
    nh = ap["num_heads"]
    bt = _batch_tile(B)
    grid = (B // bt,)

    flops = (2 * B * T * D * 2 * D + 4 * B * D * D + 4 * B * T * nh * D
             + 2 * B * D * H2 + 2 * B * H2 * O)
    transc = B * T * nh + B
    byts = 4 * (B * T * D + 4 * D * D + D * H2 + H2 * O + nh * D + B * O)

    kern = functools.partial(_attn_head_kernel, num_heads=nh)
    out = pl.pallas_call(
        kern,
        out_shape=jax.ShapeDtypeStruct((B, 1, O), jnp.float32),
        grid=grid,
        in_specs=[
            pl.BlockSpec((bt, T, D), lambda i: (i, 0, 0)),
            pl.BlockSpec((D, D), lambda i: (0, 0)),        # wq
            pl.BlockSpec((D, 2 * D), lambda i: (0, 0)),    # [wk | wv]
            pl.BlockSpec((D, D), lambda i: (0, 0)),        # wo
            pl.BlockSpec((1, D), lambda i: (0, 0)),        # bq
            pl.BlockSpec((1, 2 * D), lambda i: (0, 0)),    # [bk | bv]
            pl.BlockSpec((1, D), lambda i: (0, 0)),        # bo
            pl.BlockSpec((nh, D), lambda i: (0, 0)),       # head-selector maskT
            pl.BlockSpec((1, D), lambda i: (0, 0)),        # ln gamma
            pl.BlockSpec((1, D), lambda i: (0, 0)),        # ln beta
            pl.BlockSpec((D, H2), lambda i: (0, 0)),       # fc1_w
            pl.BlockSpec((1, H2), lambda i: (0, 0)),       # fc1_b
            pl.BlockSpec((H2, O), lambda i: (0, 0)),       # fc2_w
            pl.BlockSpec((1, O), lambda i: (0, 0)),        # fc2_b
        ],
        out_specs=pl.BlockSpec((bt, 1, O), lambda i: (i, 0, 0)),
        compiler_params=pltpu.CompilerParams(
            dimension_semantics=("parallel",),
            vmem_limit_bytes=32 * 1024 * 1024,
        ),
        cost_estimate=pl.CostEstimate(flops=flops, transcendentals=transc,
                                      bytes_accessed=byts),
    )(x, ap["wq"], ap["wkv"], ap["wo"],
      ap["bq"], ap["bkv"], ap["bo"],
      ap["maskT"], ap["ln_gamma"], ap["ln_beta"],
      ap["fc1_w"], ap["fc1_b"], ap["fc2_w"], ap["fc2_b"])
    return out[:, 0, :]


# ----------------------------------------------------------------------------
# Parameters: PyTorch-like init + one-time host-side packing into kernel layout.
# ----------------------------------------------------------------------------
def _uniform(key, shape, bound):
    return jax.random.uniform(key, shape, jnp.float32, minval=-bound, maxval=bound)


def init_params(key, input_size, hidden_sizes, output_size, num_heads=8):
    """Module-like params: per-direction LSTM weights in x@W convention with PyTorch
    gate order (i, f, g, o), b = b_ih + b_hh folded."""
    H1, H2 = hidden_sizes
    D = 2 * H2
    keys = iter(jax.random.split(key, 40))
    p = {}

    def lstm_dir(din, h):
        bd = 1.0 / (h ** 0.5)
        return dict(w_ih=_uniform(next(keys), (din, 4 * h), bd),
                    w_hh=_uniform(next(keys), (h, 4 * h), bd),
                    b=_uniform(next(keys), (4 * h,), bd))

    p["lstm1_f"] = lstm_dir(input_size, H1)
    p["lstm1_b"] = lstm_dir(input_size, H1)
    p["lstm2_f"] = lstm_dir(2 * H1, H2)
    p["lstm2_b"] = lstm_dir(2 * H1, H2)

    bd = 1.0 / (D ** 0.5)
    for name in ("wq", "wk", "wv", "wo"):
        p[name] = _uniform(next(keys), (D, D), bd)
    for name in ("bq", "bk", "bv", "bo"):
        p[name] = _uniform(next(keys), (D,), bd)

    p["ln_gamma"] = jnp.ones((D,), jnp.float32)
    p["ln_beta"] = jnp.zeros((D,), jnp.float32)

    p["fc1_w"] = _uniform(next(keys), (D, H2), 1.0 / (D ** 0.5))
    p["fc1_b"] = _uniform(next(keys), (H2,), 1.0 / (D ** 0.5))
    p["fc2_w"] = _uniform(next(keys), (H2, output_size), 1.0 / (H2 ** 0.5))
    p["fc2_b"] = _uniform(next(keys), (output_size,), 1.0 / (H2 ** 0.5))
    p["num_heads"] = num_heads
    return p


def _reorder_gates(w, axis):
    """PyTorch gate order (i, f, g, o) -> kernel gate order (i, f, o, g) along `axis`."""
    i, f, g, o = jnp.split(w, 4, axis=axis)
    return jnp.concatenate([i, f, o, g], axis=axis)


def _pack_bilstm(pf, pb):
    H = pf["w_hh"].shape[0]
    wih = jnp.concatenate([_reorder_gates(pf["w_ih"], 1),
                           _reorder_gates(pb["w_ih"], 1)], axis=1)            # (Din, 8H)
    z = jnp.zeros((H, 4 * H), jnp.float32)
    whh = jnp.concatenate([
        jnp.concatenate([_reorder_gates(pf["w_hh"], 1), z], axis=1),
        jnp.concatenate([z, _reorder_gates(pb["w_hh"], 1)], axis=1)], axis=0)  # (2H, 8H)
    b = jnp.concatenate([_reorder_gates(pf["b"].reshape(1, -1), 1),
                         _reorder_gates(pb["b"].reshape(1, -1), 1)], axis=1)   # (1, 8H)
    return dict(w_ih=wih, w_hh=whh, b=b)


def pack_params(p):
    """One-time host-side transform: module-style params -> kernel-ready layout."""
    D = p["wq"].shape[0]
    nh = p["num_heads"]
    hd = D // nh
    maskT = (jnp.arange(D)[None, :] // hd
             == jnp.arange(nh)[:, None]).astype(jnp.float32)                  # (nh, D)
    attn = dict(
        wq=p["wq"], bq=p["bq"].reshape(1, D),
        wkv=jnp.concatenate([p["wk"], p["wv"]], axis=1),
        bkv=jnp.concatenate([p["bk"], p["bv"]]).reshape(1, 2 * D),
        wo=p["wo"], bo=p["bo"].reshape(1, D),
        maskT=maskT,
        ln_gamma=p["ln_gamma"].reshape(1, D), ln_beta=p["ln_beta"].reshape(1, D),
        fc1_w=p["fc1_w"], fc1_b=p["fc1_b"].reshape(1, -1),
        fc2_w=p["fc2_w"], fc2_b=p["fc2_b"].reshape(1, -1),
        num_heads=nh,
    )
    return dict(lstm1=_pack_bilstm(p["lstm1_f"], p["lstm1_b"]),
                lstm2=_pack_bilstm(p["lstm2_f"], p["lstm2_b"]),
                attn=attn)


def enhanced_lstm_with_attention(packed, x):
    """Forward pass. x: (B, T, input_size) float32 -> (B, output_size)."""
    out = bilstm_layer(x, packed["lstm1"])          # dropout1 == identity (eval mode)
    out = bilstm_layer(out, packed["lstm2"])        # dropout2 == identity
    return attention_and_head(out, packed["attn"])  # dropout3 == identity
    # TODO(synk): training-mode stochastic dropout would need pltpu.prng_* in-kernel.


if __name__ == "__main__":
    B, T = 2, 8
    input_size = 16
    hidden_sizes = [32, 32]
    output_size = 4

    key = jax.random.PRNGKey(0)
    kx, kp = jax.random.split(key)
    x = jax.random.normal(kx, (B, T, input_size), jnp.float32)
    params = init_params(kp, input_size, hidden_sizes, output_size)
    packed = pack_params(params)

    y = enhanced_lstm_with_attention(packed, x)
    y = jax.block_until_ready(y)
    assert y.shape == (B, output_size)
    assert bool(jnp.all(jnp.isfinite(y)))
    print("KERNEL_OK")
</pallas_src>

<mosaic_0001>
module attributes {stable_mosaic.version = 11 : i64} {
  func.func @_bilstm_kernel(%arg0: i32, %arg1: memref<1x8x16xf32, #tpu.memory_space<vmem>>, %arg2: memref<16x256xf32, #tpu.memory_space<vmem>>, %arg3: memref<64x256xf32, #tpu.memory_space<vmem>>, %arg4: memref<1x256xf32, #tpu.memory_space<vmem>>, %arg5: memref<1x8x64xf32, #tpu.memory_space<vmem>>, %arg6: memref<1x8x256xf32, #tpu.memory_space<vmem>>) attributes {dimension_semantics = [#tpu.dimension_semantics<parallel>], iteration_bounds = array<i64: 2>, scalar_prefetch = 0 : i64, scratch_operands = 1 : i64, tpu.core_type = #tpu.core_type<tc>, window_params = [{transform_indices = @transform_0, window_bounds = array<i64: 1, 8, 16>}, {pipeline_mode = #tpu.pipeline_mode<synchronous>, transform_indices = @transform_1, window_bounds = array<i64: 16, 256>}, {pipeline_mode = #tpu.pipeline_mode<synchronous>, transform_indices = @transform_2, window_bounds = array<i64: 64, 256>}, {pipeline_mode = #tpu.pipeline_mode<synchronous>, transform_indices = @transform_3, window_bounds = array<i64: 1, 256>}, {transform_indices = @transform_4, window_bounds = array<i64: 1, 8, 64>}]} {
    %c0 = arith.constant 0 : index
    %c0_0 = arith.constant 0 : index
    %c0_1 = arith.constant 0 : index
    %0 = vector.load %arg1[%c0, %c0_0, %c0_1] : memref<1x8x16xf32, #tpu.memory_space<vmem>>, vector<1x8x16xf32>
    %1 = vector.shape_cast %0 : vector<1x8x16xf32> to vector<8x16xf32>
    %c0_2 = arith.constant 0 : index
    %c0_3 = arith.constant 0 : index
    %2 = vector.load %arg2[%c0_2, %c0_3] : memref<16x256xf32, #tpu.memory_space<vmem>>, vector<16x256xf32>
    %cst = arith.constant dense<0.000000e+00> : vector<8x256xf32>
    %3 = tpu.matmul %1, %2, %cst {dimension_numbers = #tpu.dot_dimension_numbers<[1], [0], [0], [1], [0, 0, 1, 1], [], []>} : vector<8x16xf32>, vector<16x256xf32>, vector<8x256xf32> -> vector<8x256xf32>
    %c0_4 = arith.constant 0 : index
    %c0_5 = arith.constant 0 : index
    %4 = vector.load %arg4[%c0_4, %c0_5] : memref<1x256xf32, #tpu.memory_space<vmem>>, vector<1x256xf32>
    %5 = vector.broadcast %4 : vector<1x256xf32> to vector<8x256xf32>
    %6 = arith.addf %3, %5 : vector<8x256xf32>
    %7 = vector.shape_cast %6 : vector<8x256xf32> to vector<1x8x256xf32>
    %c0_6 = arith.constant 0 : index
    %c0_7 = arith.constant 0 : index
    %c0_8 = arith.constant 0 : index
    %8 = vector.load %arg6[%c0_6, %c0_7, %c0_8] : memref<1x8x256xf32, #tpu.memory_space<vmem>>, vector<1x8x256xf32>
    tpu.vector_store %arg6[%c0_6, %c0_7, %c0_8], %7 {strides = array<i32>} : memref<1x8x256xf32, #tpu.memory_space<vmem>>, vector<1x8x256xf32>,
    %c0_9 = arith.constant 0 : index
    %c0_10 = arith.constant 0 : index
    %9 = vector.load %arg3[%c0_9, %c0_10] : memref<64x256xf32, #tpu.memory_space<vmem>>, vector<64x256xf32>
    %cst_11 = arith.constant 0.000000e+00 : f32
    %10 = vector.broadcast %cst_11 : f32 to vector<1x32xf32>
    %11 = tpu.concatenate %10, %10 in 1 : vector<1x32xf32>, vector<1x32xf32> -> vector<1x64xf32>
    %cst_12 = arith.constant dense<0.000000e+00> : vector<1x256xf32>
    %12 = tpu.matmul %11, %9, %cst_12 {dimension_numbers = #tpu.dot_dimension_numbers<[1], [0], [0], [1], [0, 0, 1, 1], [], []>} : vector<1x64xf32>, vector<64x256xf32>, vector<1x256xf32> -> vector<1x256xf32>
    %13 = vector.extract_strided_slice %12 {offsets = [0, 0], sizes = [1, 128], strides = [1, 1]} : vector<1x256xf32> to vector<1x128xf32>
    %c0_13 = arith.constant 0 : index
    %c0_14 = arith.constant 0 : index
    %c0_15 = arith.constant 0 : index
    %14 = vector.load %arg6[%c0_13, %c0_14, %c0_15] : memref<1x8x256xf32, #tpu.memory_space<vmem>>, vector<1x1x128xf32>
    %15 = vector.shape_cast %14 : vector<1x1x128xf32> to vector<1x128xf32>
    %16 = arith.addf %13, %15 : vector<1x128xf32>
    %17 = vector.extract_strided_slice %12 {offsets = [0, 128], sizes = [1, 128], strides = [1, 1]} : vector<1x256xf32> to vector<1x128xf32>
    %c0_16 = arith.constant 0 : index
    %c7 = arith.constant 7 : index
    %c128 = arith.constant 128 : index
    %18 = vector.load %arg6[%c0_16, %c7, %c128] : memref<1x8x256xf32, #tpu.memory_space<vmem>>, vector<1x1x128xf32>
    %19 = vector.shape_cast %18 : vector<1x1x128xf32> to vector<1x128xf32>
    %20 = arith.addf %17, %19 : vector<1x128xf32>
    %21 = vector.extract_strided_slice %16 {offsets = [0, 0], sizes = [1, 96], strides = [1, 1]} : vector<1x128xf32> to vector<1x96xf32>
    %22 = arith.negf %21 : vector<1x96xf32>
    %23 = math.exp %22 : vector<1x96xf32>
    %cst_17 = arith.constant 1.000000e+00 : f32
    %24 = vector.broadcast %cst_17 : f32 to vector<1x96xf32>
    %25 = arith.addf %24, %23 : vector<1x96xf32>
    %26 = arith.divf %24, %25 : vector<1x96xf32>
    %27 = vector.extract_strided_slice %16 {offsets = [0, 96], sizes = [1, 32], strides = [1, 1]} : vector<1x128xf32> to vector<1x32xf32>
    %28 = math.tanh %27 : vector<1x32xf32>
    %29 = vector.extract_strided_slice %26 {offsets = [0, 32], sizes = [1, 32], strides = [1, 1]} : vector<1x96xf32> to vector<1x32xf32>
    %30 = arith.mulf %29, %10 : vector<1x32xf32>
    %31 = vector.extract_strided_slice %26 {offsets = [0, 0], sizes = [1, 32], strides = [1, 1]} : vector<1x96xf32> to vector<1x32xf32>
    %32 = arith.mulf %31, %28 : vector<1x32xf32>
    %33 = arith.addf %30, %32 : vector<1x32xf32>
    %34 = vector.extract_strided_slice %26 {offsets = [0, 64], sizes = [1, 32], strides = [1, 1]} : vector<1x96xf32> to vector<1x32xf32>
    %35 = math.tanh %33 : vector<1x32xf32>
    %36 = arith.mulf %34, %35 : vector<1x32xf32>
    %37 = vector.extract_strided_slice %20 {offsets = [0, 0], sizes = [1, 96], strides = [1, 1]} : vector<1x128xf32> to vector<1x96xf32>
    %38 = arith.negf %37 : vector<1x96xf32>
    %39 = math.exp %38 : vector<1x96xf32>
    %cst_18 = arith.constant 1.000000e+00 : f32
    %40 = vector.broadcast %cst_18 : f32 to vector<1x96xf32>
    %41 = arith.addf %40, %39 : vector<1x96xf32>
    %42 = arith.divf %40, %41 : vector<1x96xf32>
    %43 = vector.extract_strided_slice %20 {offsets = [0, 96], sizes = [1, 32], strides = [1, 1]} : vector<1x128xf32> to vector<1x32xf32>
    %44 = math.tanh %43 : vector<1x32xf32>
    %45 = vector.extract_strided_slice %42 {offsets = [0, 32], sizes = [1, 32], strides = [1, 1]} : vector<1x96xf32> to vector<1x32xf32>
    %46 = arith.mulf %45, %10 : vector<1x32xf32>
    %47 = vector.extract_strided_slice %42 {offsets = [0, 0], sizes = [1, 32], strides = [1, 1]} : vector<1x96xf32> to vector<1x32xf32>
    %48 = arith.mulf %47, %44 : vector<1x32xf32>
    %49 = arith.addf %46, %48 : vector<1x32xf32>
    %50 = vector.extract_strided_slice %42 {offsets = [0, 64], sizes = [1, 32], strides = [1, 1]} : vector<1x96xf32> to vector<1x32xf32>
    %51 = math.tanh %49 : vector<1x32xf32>
    %52 = arith.mulf %50, %51 : vector<1x32xf32>
    %53 = tpu.concatenate %36, %52 in 1 : vector<1x32xf32>, vector<1x32xf32> -> vector<1x64xf32>
    %cst_19 = arith.constant dense<0.000000e+00> : vector<1x256xf32>
    %54 = tpu.matmul %53, %9, %cst_19 {dimension_numbers = #tpu.dot_dimension_numbers<[1], [0], [0], [1], [0, 0, 1, 1], [], []>} : vector<1x64xf32>, vector<64x256xf32>, vector<1x256xf32> -> vector<1x256xf32>
    %55 = vector.extract_strided_slice %54 {offsets = [0, 0], sizes = [1, 128], strides = [1, 1]} : vector<1x256xf32> to vector<1x128xf32>
    %c0_20 = arith.constant 0 : index
    %c1 = arith.constant 1 : index
    %c0_21 = arith.constant 0 : index
    %56 = vector.load %arg6[%c0_20, %c1, %c0_21] : memref<1x8x256xf32, #tpu.memory_space<vmem>>, vector<1x1x128xf32>
    %57 = vector.shape_cast %56 : vector<1x1x128xf32> to vector<1x128xf32>
    %58 = arith.addf %55, %57 : vector<1x128xf32>
    %59 = vector.extract_strided_slice %54 {offsets = [0, 128], sizes = [1, 128], strides = [1, 1]} : vector<1x256xf32> to vector<1x128xf32>
    %c0_22 = arith.constant 0 : index
    %c6 = arith.constant 6 : index
    %c128_23 = arith.constant 128 : index
    %60 = vector.load %arg6[%c0_22, %c6, %c128_23] : memref<1x8x256xf32, #tpu.memory_space<vmem>>, vector<1x1x128xf32>
    %61 = vector.shape_cast %60 : vector<1x1x128xf32> to vector<1x128xf32>
    %62 = arith.addf %59, %61 : vector<1x128xf32>
    %63 = vector.extract_strided_slice %58 {offsets = [0, 0], sizes = [1, 96], strides = [1, 1]} : vector<1x128xf32> to vector<1x96xf32>
    %64 = arith.negf %63 : vector<1x96xf32>
    %65 = math.exp %64 : vector<1x96xf32>
    %cst_24 = arith.constant 1.000000e+00 : f32
    %66 = vector.broadcast %cst_24 : f32 to vector<1x96xf32>
    %67 = arith.addf %66, %65 : vector<1x96xf32>
    %68 = arith.divf %66, %67 : vector<1x96xf32>
    %69 = vector.extract_strided_slice %58 {offsets = [0, 96], sizes = [1, 32], strides = [1, 1]} : vector<1x128xf32> to vector<1x32xf32>
    %70 = math.tanh %69 : vector<1x32xf32>
    %71 = vector.extract_strided_slice %68 {offsets = [0, 32], sizes = [1, 32], strides = [1, 1]} : vector<1x96xf32> to vector<1x32xf32>
    %72 = arith.mulf %71, %33 : vector<1x32xf32>
    %73 = vector.extract_strided_slice %68 {offsets = [0, 0], sizes = [1, 32], strides = [1, 1]} : vector<1x96xf32> to vector<1x32xf32>
    %74 = arith.mulf %73, %70 : vector<1x32xf32>
    %75 = arith.addf %72, %74 : vector<1x32xf32>
    %76 = vector.extract_strided_slice %68 {offsets = [0, 64], sizes = [1, 32], strides = [1, 1]} : vector<1x96xf32> to vector<1x32xf32>
    %77 = math.tanh %75 : vector<1x32xf32>
    %78 = arith.mulf %76, %77 : vector<1x32xf32>
    %79 = vector.extract_strided_slice %62 {offsets = [0, 0], sizes = [1, 96], strides = [1, 1]} : vector<1x128xf32> to vector<1x96xf32>
    %80 = arith.negf %79 : vector<1x96xf32>
    %81 = math.exp %80 : vector<1x96xf32>
    %cst_25 = arith.constant 1.000000e+00 : f32
    %82 = vector.broadcast %cst_25 : f32 to vector<1x96xf32>
    %83 = arith.addf %82, %81 : vector<1x96xf32>
    %84 = arith.divf %82, %83 : vector<1x96xf32>
    %85 = vector.extract_strided_slice %62 {offsets = [0, 96], sizes = [1, 32], strides = [1, 1]} : vector<1x128xf32> to vector<1x32xf32>
    %86 = math.tanh %85 : vector<1x32xf32>
    %87 = vector.extract_strided_slice %84 {offsets = [0, 32], sizes = [1, 32], strides = [1, 1]} : vector<1x96xf32> to vector<1x32xf32>
    %88 = arith.mulf %87, %49 : vector<1x32xf32>
    %89 = vector.extract_strided_slice %84 {offsets = [0, 0], sizes = [1, 32], strides = [1, 1]} : vector<1x96xf32> to vector<1x32xf32>
    %90 = arith.mulf %89, %86 : vector<1x32xf32>
    %91 = arith.addf %88, %90 : vector<1x32xf32>
    %92 = vector.extract_strided_slice %84 {offsets = [0, 64], sizes = [1, 32], strides = [1, 1]} : vector<1x96xf32> to vector<1x32xf32>
    %93 = math.tanh %91 : vector<1x32xf32>
    %94 = arith.mulf %92, %93 : vector<1x32xf32>
    %95 = tpu.concatenate %78, %94 in 1 : vector<1x32xf32>, vector<1x32xf32> -> vector<1x64xf32>
    %cst_26 = arith.constant dense<0.000000e+00> : vector<1x256xf32>
    %96 = tpu.matmul %95, %9, %cst_26 {dimension_numbers = #tpu.dot_dimension_numbers<[1], [0], [0], [1], [0, 0, 1, 1], [], []>} : vector<1x64xf32>, vector<64x256xf32>, vector<1x256xf32> -> vector<1x256xf32>
    %97 = vector.extract_strided_slice %96 {offsets = [0, 0], sizes = [1, 128], strides = [1, 1]} : vector<1x256xf32> to vector<1x128xf32>
    %c0_27 = arith.constant 0 : index
    %c2 = arith.constant 2 : index
    %c0_28 = arith.constant 0 : index
    %98 = vector.load %arg6[%c0_27, %c2, %c0_28] : memref<1x8x256xf32, #tpu.memory_space<vmem>>, vector<1x1x128xf32>
    %99 = vector.shape_cast %98 : vector<1x1x128xf32> to vector<1x128xf32>
    %100 = arith.addf %97, %99 : vector<1x128xf32>
    %101 = vector.extract_strided_slice %96 {offsets = [0, 128], sizes = [1, 128], strides = [1, 1]} : vector<1x256xf32> to vector<1x128xf32>
    %c0_29 = arith.constant 0 : index
    %c5 = arith.constant 5 : index
    %c128_30 = arith.constant 128 : index
    %102 = vector.load %arg6[%c0_29, %c5, %c128_30] : memref<1x8x256xf32, #tpu.memory_space<vmem>>, vector<1x1x128xf32>
    %103 = vector.shape_cast %102 : vector<1x1x128xf32> to vector<1x128xf32>
    %104 = arith.addf %101, %103 : vector<1x128xf32>
    %105 = vector.extract_strided_slice %100 {offsets = [0, 0], sizes = [1, 96], strides = [1, 1]} : vector<1x128xf32> to vector<1x96xf32>
    %106 = arith.negf %105 : vector<1x96xf32>
    %107 = math.exp %106 : vector<1x96xf32>
    %cst_31 = arith.constant 1.000000e+00 : f32
    %108 = vector.broadcast %cst_31 : f32 to vector<1x96xf32>
    %109 = arith.addf %108, %107 : vector<1x96xf32>
    %110 = arith.divf %108, %109 : vector<1x96xf32>
    %111 = vector.extract_strided_slice %100 {offsets = [0, 96], sizes = [1, 32], strides = [1, 1]} : vector<1x128xf32> to vector<1x32xf32>
    %112 = math.tanh %111 : vector<1x32xf32>
    %113 = vector.extract_strided_slice %110 {offsets = [0, 32], sizes = [1, 32], strides = [1, 1]} : vector<1x96xf32> to vector<1x32xf32>
    %114 = arith.mulf %113, %75 : vector<1x32xf32>
    %115 = vector.extract_strided_slice %110 {offsets = [0, 0], sizes = [1, 32], strides = [1, 1]} : vector<1x96xf32> to vector<1x32xf32>
    %116 = arith.mulf %115, %112 : vector<1x32xf32>
    %117 = arith.addf %114, %116 : vector<1x32xf32>
    %118 = vector.extract_strided_slice %110 {offsets = [0, 64], sizes = [1, 32], strides = [1, 1]} : vector<1x96xf32> to vector<1x32xf32>
    %119 = math.tanh %117 : vector<1x32xf32>
    %120 = arith.mulf %118, %119 : vector<1x32xf32>
    %121 = vector.extract_strided_slice %104 {offsets = [0, 0], sizes = [1, 96], strides = [1, 1]} : vector<1x128xf32> to vector<1x96xf32>
    %122 = arith.negf %121 : vector<1x96xf32>
    %123 = math.exp %122 : vector<1x96xf32>
    %cst_32 = arith.constant 1.000000e+00 : f32
    %124 = vector.broadcast %cst_32 : f32 to vector<1x96xf32>
    %125 = arith.addf %124, %123 : vector<1x96xf32>
    %126 = arith.divf %124, %125 : vector<1x96xf32>
    %127 = vector.extract_strided_slice %104 {offsets = [0, 96], sizes = [1, 32], strides = [1, 1]} : vector<1x128xf32> to vector<1x32xf32>
    %128 = math.tanh %127 : vector<1x32xf32>
    %129 = vector.extract_strided_slice %126 {offsets = [0, 32], sizes = [1, 32], strides = [1, 1]} : vector<1x96xf32> to vector<1x32xf32>
    %130 = arith.mulf %129, %91 : vector<1x32xf32>
    %131 = vector.extract_strided_slice %126 {offsets = [0, 0], sizes = [1, 32], strides = [1, 1]} : vector<1x96xf32> to vector<1x32xf32>
    %132 = arith.mulf %131, %128 : vector<1x32xf32>
    %133 = arith.addf %130, %132 : vector<1x32xf32>
    %134 = vector.extract_strided_slice %126 {offsets = [0, 64], sizes = [1, 32], strides = [1, 1]} : vector<1x96xf32> to vector<1x32xf32>
    %135 = math.tanh %133 : vector<1x32xf32>
    %136 = arith.mulf %134, %135 : vector<1x32xf32>
    %137 = tpu.concatenate %120, %136 in 1 : vector<1x32xf32>, vector<1x32xf32> -> vector<1x64xf32>
    %cst_33 = arith.constant dense<0.000000e+00> : vector<1x256xf32>
    %138 = tpu.matmul %137, %9, %cst_33 {dimension_numbers = #tpu.dot_dimension_numbers<[1], [0], [0], [1], [0, 0, 1, 1], [], []>} : vector<1x64xf32>, vector<64x256xf32>, vector<1x256xf32> -> vector<1x256xf32>
    %139 = vector.extract_strided_slice %138 {offsets = [0, 0], sizes = [1, 128], strides = [1, 1]} : vector<1x256xf32> to vector<1x128xf32>
    %c0_34 = arith.constant 0 : index
    %c3 = arith.constant 3 : index
    %c0_35 = arith.constant 0 : index
    %140 = vector.load %arg6[%c0_34, %c3, %c0_35] : memref<1x8x256xf32, #tpu.memory_space<vmem>>, vector<1x1x128xf32>
    %141 = vector.shape_cast %140 : vector<1x1x128xf32> to vector<1x128xf32>
    %142 = arith.addf %139, %141 : vector<1x128xf32>
    %143 = vector.extract_strided_slice %138 {offsets = [0, 128], sizes = [1, 128], strides = [1, 1]} : vector<1x256xf32> to vector<1x128xf32>
    %c0_36 = arith.constant 0 : index
    %c4 = arith.constant 4 : index
    %c128_37 = arith.constant 128 : index
    %144 = vector.load %arg6[%c0_36, %c4, %c128_37] : memref<1x8x256xf32, #tpu.memory_space<vmem>>, vector<1x1x128xf32>
    %145 = vector.shape_cast %144 : vector<1x1x128xf32> to vector<1x128xf32>
    %146 = arith.addf %143, %145 : vector<1x128xf32>
    %147 = vector.extract_strided_slice %142 {offsets = [0, 0], sizes = [1, 96], strides = [1, 1]} : vector<1x128xf32> to vector<1x96xf32>
    %148 = arith.negf %147 : vector<1x96xf32>
    %149 = math.exp %148 : vector<1x96xf32>
    %cst_38 = arith.constant 1.000000e+00 : f32
    %150 = vector.broadcast %cst_38 : f32 to vector<1x96xf32>
    %151 = arith.addf %150, %149 : vector<1x96xf32>
    %152 = arith.divf %150, %151 : vector<1x96xf32>
    %153 = vector.extract_strided_slice %142 {offsets = [0, 96], sizes = [1, 32], strides = [1, 1]} : vector<1x128xf32> to vector<1x32xf32>
    %154 = math.tanh %153 : vector<1x32xf32>
    %155 = vector.extract_strided_slice %152 {offsets = [0, 32], sizes = [1, 32], strides = [1, 1]} : vector<1x96xf32> to vector<1x32xf32>
    %156 = arith.mulf %155, %117 : vector<1x32xf32>
    %157 = vector.extract_strided_slice %152 {offsets = [0, 0], sizes = [1, 32], strides = [1, 1]} : vector<1x96xf32> to vector<1x32xf32>
    %158 = arith.mulf %157, %154 : vector<1x32xf32>
    %159 = arith.addf %156, %158 : vector<1x32xf32>
    %160 = vector.extract_strided_slice %152 {offsets = [0, 64], sizes = [1, 32], strides = [1, 1]} : vector<1x96xf32> to vector<1x32xf32>
    %161 = math.tanh %159 : vector<1x32xf32>
    %162 = arith.mulf %160, %161 : vector<1x32xf32>
    %163 = vector.extract_strided_slice %146 {offsets = [0, 0], sizes = [1, 96], strides = [1, 1]} : vector<1x128xf32> to vector<1x96xf32>
    %164 = arith.negf %163 : vector<1x96xf32>
    %165 = math.exp %164 : vector<1x96xf32>
    %cst_39 = arith.constant 1.000000e+00 : f32
    %166 = vector.broadcast %cst_39 : f32 to vector<1x96xf32>
    %167 = arith.addf %166, %165 : vector<1x96xf32>
    %168 = arith.divf %166, %167 : vector<1x96xf32>
    %169 = vector.extract_strided_slice %146 {offsets = [0, 96], sizes = [1, 32], strides = [1, 1]} : vector<1x128xf32> to vector<1x32xf32>
    %170 = math.tanh %169 : vector<1x32xf32>
    %171 = vector.extract_strided_slice %168 {offsets = [0, 32], sizes = [1, 32], strides = [1, 1]} : vector<1x96xf32> to vector<1x32xf32>
    %172 = arith.mulf %171, %133 : vector<1x32xf32>
    %173 = vector.extract_strided_slice %168 {offsets = [0, 0], sizes = [1, 32], strides = [1, 1]} : vector<1x96xf32> to vector<1x32xf32>
    %174 = arith.mulf %173, %170 : vector<1x32xf32>
    %175 = arith.addf %172, %174 : vector<1x32xf32>
    %176 = vector.extract_strided_slice %168 {offsets = [0, 64], sizes = [1, 32], strides = [1, 1]} : vector<1x96xf32> to vector<1x32xf32>
    %177 = math.tanh %175 : vector<1x32xf32>
    %178 = arith.mulf %176, %177 : vector<1x32xf32>
    %179 = tpu.concatenate %162, %178 in 1 : vector<1x32xf32>, vector<1x32xf32> -> vector<1x64xf32>
    %cst_40 = arith.constant dense<0.000000e+00> : vector<1x256xf32>
    %180 = tpu.matmul %179, %9, %cst_40 {dimension_numbers = #tpu.dot_dimension_numbers<[1], [0], [0], [1], [0, 0, 1, 1], [], []>} : vector<1x64xf32>, vector<64x256xf32>, vector<1x256xf32> -> vector<1x256xf32>
    %181 = vector.extract_strided_slice %180 {offsets = [0, 0], sizes = [1, 128], strides = [1, 1]} : vector<1x256xf32> to vector<1x128xf32>
    %c0_41 = arith.constant 0 : index
    %c4_42 = arith.constant 4 : index
    %c0_43 = arith.constant 0 : index
    %182 = vector.load %arg6[%c0_41, %c4_42, %c0_43] : memref<1x8x256xf32, #tpu.memory_space<vmem>>, vector<1x1x128xf32>
    %183 = vector.shape_cast %182 : vector<1x1x128xf32> to vector<1x128xf32>
    %184 = arith.addf %181, %183 : vector<1x128xf32>
    %185 = vector.extract_strided_slice %180 {offsets = [0, 128], sizes = [1, 128], strides = [1, 1]} : vector<1x256xf32> to vector<1x128xf32>
    %c0_44 = arith.constant 0 : index
    %c3_45 = arith.constant 3 : index
    %c128_46 = arith.constant 128 : index
    %186 = vector.load %arg6[%c0_44, %c3_45, %c128_46] : memref<1x8x256xf32, #tpu.memory_space<vmem>>, vector<1x1x128xf32>
    %187 = vector.shape_cast %186 : vector<1x1x128xf32> to vector<1x128xf32>
    %188 = arith.addf %185, %187 : vector<1x128xf32>
    %189 = vector.extract_strided_slice %184 {offsets = [0, 0], sizes = [1, 96], strides = [1, 1]} : vector<1x128xf32> to vector<1x96xf32>
    %190 = arith.negf %189 : vector<1x96xf32>
    %191 = math.exp %190 : vector<1x96xf32>
    %cst_47 = arith.constant 1.000000e+00 : f32
    %192 = vector.broadcast %cst_47 : f32 to vector<1x96xf32>
    %193 = arith.addf %192, %191 : vector<1x96xf32>
    %194 = arith.divf %192, %193 : vector<1x96xf32>
    %195 = vector.extract_strided_slice %184 {offsets = [0, 96], sizes = [1, 32], strides = [1, 1]} : vector<1x128xf32> to vector<1x32xf32>
    %196 = math.tanh %195 : vector<1x32xf32>
    %197 = vector.extract_strided_slice %194 {offsets = [0, 32], sizes = [1, 32], strides = [1, 1]} : vector<1x96xf32> to vector<1x32xf32>
    %198 = arith.mulf %197, %159 : vector<1x32xf32>
    %199 = vector.extract_strided_slice %194 {offsets = [0, 0], sizes = [1, 32], strides = [1, 1]} : vector<1x96xf32> to vector<1x32xf32>
    %200 = arith.mulf %199, %196 : vector<1x32xf32>
    %201 = arith.addf %198, %200 : vector<1x32xf32>
    %202 = vector.extract_strided_slice %194 {offsets = [0, 64], sizes = [1, 32], strides = [1, 1]} : vector<1x96xf32> to vector<1x32xf32>
    %203 = math.tanh %201 : vector<1x32xf32>
    %204 = arith.mulf %202, %203 : vector<1x32xf32>
    %205 = vector.extract_strided_slice %188 {offsets = [0, 0], sizes = [1, 96], strides = [1, 1]} : vector<1x128xf32> to vector<1x96xf32>
    %206 = arith.negf %205 : vector<1x96xf32>
    %207 = math.exp %206 : vector<1x96xf32>
    %cst_48 = arith.constant 1.000000e+00 : f32
    %208 = vector.broadcast %cst_48 : f32 to vector<1x96xf32>
    %209 = arith.addf %208, %207 : vector<1x96xf32>
    %210 = arith.divf %208, %209 : vector<1x96xf32>
    %211 = vector.extract_strided_slice %188 {offsets = [0, 96], sizes = [1, 32], strides = [1, 1]} : vector<1x128xf32> to vector<1x32xf32>
    %212 = math.tanh %211 : vector<1x32xf32>
    %213 = vector.extract_strided_slice %210 {offsets = [0, 32], sizes = [1, 32], strides = [1, 1]} : vector<1x96xf32> to vector<1x32xf32>
    %214 = arith.mulf %213, %175 : vector<1x32xf32>
    %215 = vector.extract_strided_slice %210 {offsets = [0, 0], sizes = [1, 32], strides = [1, 1]} : vector<1x96xf32> to vector<1x32xf32>
    %216 = arith.mulf %215, %212 : vector<1x32xf32>
    %217 = arith.addf %214, %216 : vector<1x32xf32>
    %218 = vector.extract_strided_slice %210 {offsets = [0, 64], sizes = [1, 32], strides = [1, 1]} : vector<1x96xf32> to vector<1x32xf32>
    %219 = math.tanh %217 : vector<1x32xf32>
    %220 = arith.mulf %218, %219 : vector<1x32xf32>
    %221 = tpu.concatenate %204, %220 in 1 : vector<1x32xf32>, vector<1x32xf32> -> vector<1x64xf32>
    %cst_49 = arith.constant dense<0.000000e+00> : vector<1x256xf32>
    %222 = tpu.matmul %221, %9, %cst_49 {dimension_numbers = #tpu.dot_dimension_numbers<[1], [0], [0], [1], [0, 0, 1, 1], [], []>} : vector<1x64xf32>, vector<64x256xf32>, vector<1x256xf32> -> vector<1x256xf32>
    %223 = vector.extract_strided_slice %222 {offsets = [0, 0], sizes = [1, 128], strides = [1, 1]} : vector<1x256xf32> to vector<1x128xf32>
    %c0_50 = arith.constant 0 : index
    %c5_51 = arith.constant 5 : index
    %c0_52 = arith.constant 0 : index
    %224 = vector.load %arg6[%c0_50, %c5_51, %c0_52] : memref<1x8x256xf32, #tpu.memory_space<vmem>>, vector<1x1x128xf32>
    %225 = vector.shape_cast %224 : vector<1x1x128xf32> to vector<1x128xf32>
    %226 = arith.addf %223, %225 : vector<1x128xf32>
    %227 = vector.extract_strided_slice %222 {offsets = [0, 128], sizes = [1, 128], strides = [1, 1]} : vector<1x256xf32> to vector<1x128xf32>
    %c0_53 = arith.constant 0 : index
    %c2_54 = arith.constant 2 : index
    %c128_55 = arith.constant 128 : index
    %228 = vector.load %arg6[%c0_53, %c2_54, %c128_55] : memref<1x8x256xf32, #tpu.memory_space<vmem>>, vector<1x1x128xf32>
    %229 = vector.shape_cast %228 : vector<1x1x128xf32> to vector<1x128xf32>
    %230 = arith.addf %227, %229 : vector<1x128xf32>
    %231 = vector.extract_strided_slice %226 {offsets = [0, 0], sizes = [1, 96], strides = [1, 1]} : vector<1x128xf32> to vector<1x96xf32>
    %232 = arith.negf %231 : vector<1x96xf32>
    %233 = math.exp %232 : vector<1x96xf32>
    %cst_56 = arith.constant 1.000000e+00 : f32
    %234 = vector.broadcast %cst_56 : f32 to vector<1x96xf32>
    %235 = arith.addf %234, %233 : vector<1x96xf32>
    %236 = arith.divf %234, %235 : vector<1x96xf32>
    %237 = vector.extract_strided_slice %226 {offsets = [0, 96], sizes = [1, 32], strides = [1, 1]} : vector<1x128xf32> to vector<1x32xf32>
    %238 = math.tanh %237 : vector<1x32xf32>
    %239 = vector.extract_strided_slice %236 {offsets = [0, 32], sizes = [1, 32], strides = [1, 1]} : vector<1x96xf32> to vector<1x32xf32>
    %240 = arith.mulf %239, %201 : vector<1x32xf32>
    %241 = vector.extract_strided_slice %236 {offsets = [0, 0], sizes = [1, 32], strides = [1, 1]} : vector<1x96xf32> to vector<1x32xf32>
    %242 = arith.mulf %241, %238 : vector<1x32xf32>
    %243 = arith.addf %240, %242 : vector<1x32xf32>
    %244 = vector.extract_strided_slice %236 {offsets = [0, 64], sizes = [1, 32], strides = [1, 1]} : vector<1x96xf32> to vector<1x32xf32>
    %245 = math.tanh %243 : vector<1x32xf32>
    %246 = arith.mulf %244, %245 : vector<1x32xf32>
    %247 = vector.extract_strided_slice %230 {offsets = [0, 0], sizes = [1, 96], strides = [1, 1]} : vector<1x128xf32> to vector<1x96xf32>
    %248 = arith.negf %247 : vector<1x96xf32>
    %249 = math.exp %248 : vector<1x96xf32>
    %cst_57 = arith.constant 1.000000e+00 : f32
    %250 = vector.broadcast %cst_57 : f32 to vector<1x96xf32>
    %251 = arith.addf %250, %249 : vector<1x96xf32>
    %252 = arith.divf %250, %251 : vector<1x96xf32>
    %253 = vector.extract_strided_slice %230 {offsets = [0, 96], sizes = [1, 32], strides = [1, 1]} : vector<1x128xf32> to vector<1x32xf32>
    %254 = math.tanh %253 : vector<1x32xf32>
    %255 = vector.extract_strided_slice %252 {offsets = [0, 32], sizes = [1, 32], strides = [1, 1]} : vector<1x96xf32> to vector<1x32xf32>
    %256 = arith.mulf %255, %217 : vector<1x32xf32>
    %257 = vector.extract_strided_slice %252 {offsets = [0, 0], sizes = [1, 32], strides = [1, 1]} : vector<1x96xf32> to vector<1x32xf32>
    %258 = arith.mulf %257, %254 : vector<1x32xf32>
    %259 = arith.addf %256, %258 : vector<1x32xf32>
    %260 = vector.extract_strided_slice %252 {offsets = [0, 64], sizes = [1, 32], strides = [1, 1]} : vector<1x96xf32> to vector<1x32xf32>
    %261 = math.tanh %259 : vector<1x32xf32>
    %262 = arith.mulf %260, %261 : vector<1x32xf32>
    %263 = tpu.concatenate %246, %262 in 1 : vector<1x32xf32>, vector<1x32xf32> -> vector<1x64xf32>
    %cst_58 = arith.constant dense<0.000000e+00> : vector<1x256xf32>
    %264 = tpu.matmul %263, %9, %cst_58 {dimension_numbers = #tpu.dot_dimension_numbers<[1], [0], [0], [1], [0, 0, 1, 1], [], []>} : vector<1x64xf32>, vector<64x256xf32>, vector<1x256xf32> -> vector<1x256xf32>
    %265 = vector.extract_strided_slice %264 {offsets = [0, 0], sizes = [1, 128], strides = [1, 1]} : vector<1x256xf32> to vector<1x128xf32>
    %c0_59 = arith.constant 0 : index
    %c6_60 = arith.constant 6 : index
    %c0_61 = arith.constant 0 : index
    %266 = vector.load %arg6[%c0_59, %c6_60, %c0_61] : memref<1x8x256xf32, #tpu.memory_space<vmem>>, vector<1x1x128xf32>
    %267 = vector.shape_cast %266 : vector<1x1x128xf32> to vector<1x128xf32>
    %268 = arith.addf %265, %267 : vector<1x128xf32>
    %269 = vector.extract_strided_slice %264 {offsets = [0, 128], sizes = [1, 128], strides = [1, 1]} : vector<1x256xf32> to vector<1x128xf32>
    %c0_62 = arith.constant 0 : index
    %c1_63 = arith.constant 1 : index
    %c128_64 = arith.constant 128 : index
    %270 = vector.load %arg6[%c0_62, %c1_63, %c128_64] : memref<1x8x256xf32, #tpu.memory_space<vmem>>, vector<1x1x128xf32>
    %271 = vector.shape_cast %270 : vector<1x1x128xf32> to vector<1x128xf32>
    %272 = arith.addf %269, %271 : vector<1x128xf32>
    %273 = vector.extract_strided_slice %268 {offsets = [0, 0], sizes = [1, 96], strides = [1, 1]} : vector<1x128xf32> to vector<1x96xf32>
    %274 = arith.negf %273 : vector<1x96xf32>
    %275 = math.exp %274 : vector<1x96xf32>
    %cst_65 = arith.constant 1.000000e+00 : f32
    %276 = vector.broadcast %cst_65 : f32 to vector<1x96xf32>
    %277 = arith.addf %276, %275 : vector<1x96xf32>
    %278 = arith.divf %276, %277 : vector<1x96xf32>
    %279 = vector.extract_strided_slice %268 {offsets = [0, 96], sizes = [1, 32], strides = [1, 1]} : vector<1x128xf32> to vector<1x32xf32>
    %280 = math.tanh %279 : vector<1x32xf32>
    %281 = vector.extract_strided_slice %278 {offsets = [0, 32], sizes = [1, 32], strides = [1, 1]} : vector<1x96xf32> to vector<1x32xf32>
    %282 = arith.mulf %281, %243 : vector<1x32xf32>
    %283 = vector.extract_strided_slice %278 {offsets = [0, 0], sizes = [1, 32], strides = [1, 1]} : vector<1x96xf32> to vector<1x32xf32>
    %284 = arith.mulf %283, %280 : vector<1x32xf32>
    %285 = arith.addf %282, %284 : vector<1x32xf32>
    %286 = vector.extract_strided_slice %278 {offsets = [0, 64], sizes = [1, 32], strides = [1, 1]} : vector<1x96xf32> to vector<1x32xf32>
    %287 = math.tanh %285 : vector<1x32xf32>
    %288 = arith.mulf %286, %287 : vector<1x32xf32>
    %289 = vector.extract_strided_slice %272 {offsets = [0, 0], sizes = [1, 96], strides = [1, 1]} : vector<1x128xf32> to vector<1x96xf32>
    %290 = arith.negf %289 : vector<1x96xf32>
    %291 = math.exp %290 : vector<1x96xf32>
    %cst_66 = arith.constant 1.000000e+00 : f32
    %292 = vector.broadcast %cst_66 : f32 to vector<1x96xf32>
    %293 = arith.addf %292, %291 : vector<1x96xf32>
    %294 = arith.divf %292, %293 : vector<1x96xf32>
    %295 = vector.extract_strided_slice %272 {offsets = [0, 96], sizes = [1, 32], strides = [1, 1]} : vector<1x128xf32> to vector<1x32xf32>
    %296 = math.tanh %295 : vector<1x32xf32>
    %297 = vector.extract_strided_slice %294 {offsets = [0, 32], sizes = [1, 32], strides = [1, 1]} : vector<1x96xf32> to vector<1x32xf32>
    %298 = arith.mulf %297, %259 : vector<1x32xf32>
    %299 = vector.extract_strided_slice %294 {offsets = [0, 0], sizes = [1, 32], strides = [1, 1]} : vector<1x96xf32> to vector<1x32xf32>
    %300 = arith.mulf %299, %296 : vector<1x32xf32>
    %301 = arith.addf %298, %300 : vector<1x32xf32>
    %302 = vector.extract_strided_slice %294 {offsets = [0, 64], sizes = [1, 32], strides = [1, 1]} : vector<1x96xf32> to vector<1x32xf32>
    %303 = math.tanh %301 : vector<1x32xf32>
    %304 = arith.mulf %302, %303 : vector<1x32xf32>
    %305 = tpu.concatenate %288, %304 in 1 : vector<1x32xf32>, vector<1x32xf32> -> vector<1x64xf32>
    %cst_67 = arith.constant dense<0.000000e+00> : vector<1x256xf32>
    %306 = tpu.matmul %305, %9, %cst_67 {dimension_numbers = #tpu.dot_dimension_numbers<[1], [0], [0], [1], [0, 0, 1, 1], [], []>} : vector<1x64xf32>, vector<64x256xf32>, vector<1x256xf32> -> vector<1x256xf32>
    %307 = vector.extract_strided_slice %306 {offsets = [0, 0], sizes = [1, 128], strides = [1, 1]} : vector<1x256xf32> to vector<1x128xf32>
    %c0_68 = arith.constant 0 : index
    %c7_69 = arith.constant 7 : index
    %c0_70 = arith.constant 0 : index
    %308 = vector.load %arg6[%c0_68, %c7_69, %c0_70] : memref<1x8x256xf32, #tpu.memory_space<vmem>>, vector<1x1x128xf32>
    %309 = vector.shape_cast %308 : vector<1x1x128xf32> to vector<1x128xf32>
    %310 = arith.addf %307, %309 : vector<1x128xf32>
    %311 = vector.extract_strided_slice %306 {offsets = [0, 128], sizes = [1, 128], strides = [1, 1]} : vector<1x256xf32> to vector<1x128xf32>
    %c0_71 = arith.constant 0 : index
    %c0_72 = arith.constant 0 : index
    %c128_73 = arith.constant 128 : index
    %312 = vector.load %arg6[%c0_71, %c0_72, %c128_73] : memref<1x8x256xf32, #tpu.memory_space<vmem>>, vector<1x1x128xf32>
    %313 = vector.shape_cast %312 : vector<1x1x128xf32> to vector<1x128xf32>
    %314 = arith.addf %311, %313 : vector<1x128xf32>
    %315 = vector.extract_strided_slice %310 {offsets = [0, 0], sizes = [1, 96], strides = [1, 1]} : vector<1x128xf32> to vector<1x96xf32>
    %316 = arith.negf %315 : vector<1x96xf32>
    %317 = math.exp %316 : vector<1x96xf32>
    %cst_74 = arith.constant 1.000000e+00 : f32
    %318 = vector.broadcast %cst_74 : f32 to vector<1x96xf32>
    %319 = arith.addf %318, %317 : vector<1x96xf32>
    %320 = arith.divf %318, %319 : vector<1x96xf32>
    %321 = vector.extract_strided_slice %310 {offsets = [0, 96], sizes = [1, 32], strides = [1, 1]} : vector<1x128xf32> to vector<1x32xf32>
    %322 = math.tanh %321 : vector<1x32xf32>
    %323 = vector.extract_strided_slice %320 {offsets = [0, 32], sizes = [1, 32], strides = [1, 1]} : vector<1x96xf32> to vector<1x32xf32>
    %324 = arith.mulf %323, %285 : vector<1x32xf32>
    %325 = vector.extract_strided_slice %320 {offsets = [0, 0], sizes = [1, 32], strides = [1, 1]} : vector<1x96xf32> to vector<1x32xf32>
    %326 = arith.mulf %325, %322 : vector<1x32xf32>
    %327 = arith.addf %324, %326 : vector<1x32xf32>
    %328 = vector.extract_strided_slice %320 {offsets = [0, 64], sizes = [1, 32], strides = [1, 1]} : vector<1x96xf32> to vector<1x32xf32>
    %329 = math.tanh %327 : vector<1x32xf32>
    %330 = arith.mulf %328, %329 : vector<1x32xf32>
    %331 = vector.extract_strided_slice %314 {offsets = [0, 0], sizes = [1, 96], strides = [1, 1]} : vector<1x128xf32> to vector<1x96xf32>
    %332 = arith.negf %331 : vector<1x96xf32>
    %333 = math.exp %332 : vector<1x96xf32>
    %cst_75 = arith.constant 1.000000e+00 : f32
    %334 = vector.broadcast %cst_75 : f32 to vector<1x96xf32>
    %335 = arith.addf %334, %333 : vector<1x96xf32>
    %336 = arith.divf %334, %335 : vector<1x96xf32>
    %337 = vector.extract_strided_slice %314 {offsets = [0, 96], sizes = [1, 32], strides = [1, 1]} : vector<1x128xf32> to vector<1x32xf32>
    %338 = math.tanh %337 : vector<1x32xf32>
    %339 = vector.extract_strided_slice %336 {offsets = [0, 32], sizes = [1, 32], strides = [1, 1]} : vector<1x96xf32> to vector<1x32xf32>
    %340 = arith.mulf %339, %301 : vector<1x32xf32>
    %341 = vector.extract_strided_slice %336 {offsets = [0, 0], sizes = [1, 32], strides = [1, 1]} : vector<1x96xf32> to vector<1x32xf32>
    %342 = arith.mulf %341, %338 : vector<1x32xf32>
    %343 = arith.addf %340, %342 : vector<1x32xf32>
    %344 = vector.extract_strided_slice %336 {offsets = [0, 64], sizes = [1, 32], strides = [1, 1]} : vector<1x96xf32> to vector<1x32xf32>
    %345 = math.tanh %343 : vector<1x32xf32>
    %346 = arith.mulf %344, %345 : vector<1x32xf32>
    %347 = vector.shape_cast %36 : vector<1x32xf32> to vector<1x1x32xf32>
    %348 = vector.shape_cast %78 : vector<1x32xf32> to vector<1x1x32xf32>
    %349 = vector.shape_cast %120 : vector<1x32xf32> to vector<1x1x32xf32>
    %350 = vector.shape_cast %162 : vector<1x32xf32> to vector<1x1x32xf32>
    %351 = vector.shape_cast %204 : vector<1x32xf32> to vector<1x1x32xf32>
    %352 = vector.shape_cast %246 : vector<1x32xf32> to vector<1x1x32xf32>
    %353 = vector.shape_cast %288 : vector<1x32xf32> to vector<1x1x32xf32>
    %354 = vector.shape_cast %330 : vector<1x32xf32> to vector<1x1x32xf32>
    %355 = tpu.concatenate %347, %348, %349, %350, %351, %352, %353, %354 in 1 : vector<1x1x32xf32>, vector<1x1x32xf32>, vector<1x1x32xf32>, vector<1x1x32xf32>, vector<1x1x32xf32>, vector<1x1x32xf32>, vector<1x1x32xf32>, vector<1x1x32xf32> -> vector<1x8x32xf32>
    %356 = vector.shape_cast %346 : vector<1x32xf32> to vector<1x1x32xf32>
    %357 = vector.shape_cast %304 : vector<1x32xf32> to vector<1x1x32xf32>
    %358 = vector.shape_cast %262 : vector<1x32xf32> to vector<1x1x32xf32>
    %359 = vector.shape_cast %220 : vector<1x32xf32> to vector<1x1x32xf32>
    %360 = vector.shape_cast %178 : vector<1x32xf32> to vector<1x1x32xf32>
    %361 = vector.shape_cast %136 : vector<1x32xf32> to vector<1x1x32xf32>
    %362 = vector.shape_cast %94 : vector<1x32xf32> to vector<1x1x32xf32>
    %363 = vector.shape_cast %52 : vector<1x32xf32> to vector<1x1x32xf32>
    %364 = tpu.concatenate %356, %357, %358, %359, %360, %361, %362, %363 in 1 : vector<1x1x32xf32>, vector<1x1x32xf32>, vector<1x1x32xf32>, vector<1x1x32xf32>, vector<1x1x32xf32>, vector<1x1x32xf32>, vector<1x1x32xf32>, vector<1x1x32xf32> -> vector<1x8x32xf32>
    %365 = tpu.concatenate %355, %364 in 2 : vector<1x8x32xf32>, vector<1x8x32xf32> -> vector<1x8x64xf32>
    %c0_76 = arith.constant 0 : index
    %c0_77 = arith.constant 0 : index
    %c0_78 = arith.constant 0 : index
    %366 = vector.load %arg5[%c0_76, %c0_77, %c0_78] : memref<1x8x64xf32, #tpu.memory_space<vmem>>, vector<1x8x64xf32>
    tpu.vector_store %arg5[%c0_76, %c0_77, %c0_78], %365 {strides = array<i32>} : memref<1x8x64xf32, #tpu.memory_space<vmem>>, vector<1x8x64xf32>,
    return
  }
  func.func @transform_0(%arg0: i32) -> (i32, i32, i32) {
    %c0_i32 = arith.constant 0 : i32
    %c0_i32_0 = arith.constant 0 : i32
    %c0_i32_1 = arith.constant 0 : i32
    return %arg0, %c0_i32, %c0_i32_0 : i32, i32, i32
  }
  func.func @transform_1(%arg0: i32) -> (i32, i32) {
    %c0_i32 = arith.constant 0 : i32
    %c0_i32_0 = arith.constant 0 : i32
    %c0_i32_1 = arith.constant 0 : i32
    return %c0_i32, %c0_i32_0 : i32, i32
  }
  func.func @transform_2(%arg0: i32) -> (i32, i32) {
    %c0_i32 = arith.constant 0 : i32
    %c0_i32_0 = arith.constant 0 : i32
    %c0_i32_1 = arith.constant 0 : i32
    return %c0_i32, %c0_i32_0 : i32, i32
  }
  func.func @transform_3(%arg0: i32) -> (i32, i32) {
    %c0_i32 = arith.constant 0 : i32
    %c0_i32_0 = arith.constant 0 : i32
    %c0_i32_1 = arith.constant 0 : i32
    return %c0_i32, %c0_i32_0 : i32, i32
  }
  func.func @transform_4(%arg0: i32) -> (i32, i32, i32) {
    %c0_i32 = arith.constant 0 : i32
    %c0_i32_0 = arith.constant 0 : i32
    %c0_i32_1 = arith.constant 0 : i32
    return %arg0, %c0_i32, %c0_i32_0 : i32, i32, i32
  }
}

</mosaic_0001>

<llo_original>
// kernel: tpu_custom_call.1
$region0: #{tpu_custom_call.1}
  #allocation0 [shape = 'u32[]', space=smem, size = 0x4, offset = 0x4, fixed_abs, tag = 'smem constant byte address 0x4 - core index']
  #allocation1 [shape = 'u32[144,128]{1,0:T(1,128)}', space=vmem, size = 0x12000, scoped, tag = 'internal scratch']
  #allocation2 [shape = 'f32[1,8,256]{2,1,0:T(8,128)}', space=vmem, size = 0x2000, scoped, tag = 'scratch operand']
  %s0 = inlined_call_operand.hbm [shape: f32[2,8,16], index: 0, kind: input, shape index: {}]
  %s1 = inlined_call_operand.hbm [shape: f32[16,256], index: 1, kind: input, shape index: {}]
  %s2 = inlined_call_operand.hbm [shape: f32[64,256], index: 2, kind: input, shape index: {}]
  %s3 = inlined_call_operand.vmem [shape: f32[1,256], index: 3, kind: input, shape index: {}]
  %s4 = inlined_call_operand.hbm [shape: f32[2,8,64], index: 4, kind: output, shape index: {}]
  %s5 = sld [smem:[#allocation0]]
  $region61: #{tpu_custom_call.1} parent=0
    _
  %s7 = ssub.s32 1, %s5
  %s8 = scalar_select 0, %s7, %s5
  $region1: #{tpu_custom_call.1} parent=0
    #allocation3 [shape = 'u8[8192]{0}', space=vmem, size = 0x2000, scoped, tag = 'input window, operand 0']
    #allocation4 [shape = 's32[2]{0}', space=sflag, size = 0x8, scoped, tag = 'scoped memory for tpu_custom_call.1']
    #allocation5 [shape = 's32[2]{0}', space=sflag, size = 0x8, scoped, tag = 'scoped memory for tpu_custom_call.1']
    #allocation6 [shape = 'u8[16384]{0}', space=vmem, size = 0x4000, scoped, tag = 'input window, operand 1, single buffered']
    #allocation7 [shape = 's32[1]{0}', space=sflag, size = 0x4, scoped, tag = 'scoped memory for tpu_custom_call.1']
    #allocation8 [shape = 'u8[65536]{0}', space=vmem, size = 0x10000, scoped, tag = 'input window, operand 2, single buffered']
    #allocation9 [shape = 'u8[8192]{0}', space=vmem, size = 0x2000, scoped, tag = 'output window, operand 0']
    %9 = vsyncpa [#allocation4], 0
    %s10 = scalar_lea.sflag [#allocation4], 1
    %11 = vsyncpa %s10, 0
    %12 = vsyncpa [#allocation7], 0
    %13 = vsyncpa [#allocation5], 0
    %s14 = scalar_lea.sflag [#allocation5], 1
    %15 = vsyncpa %s14, 0
    loop: start=0, step=1, limit=4
    $region2: #{tpu_custom_call.1} parent=1 // loop_pre_header
      _
    $region3: #{tpu_custom_call.1} parent=1 // loop_header
      %s17 = sphi 0, %s21
      %p18 = scmp.ge.s32.totalorder %s17, 4
      %s27 = sphi 0, %s29
      %s30 = sphi 0, %s27
      %s31 = sphi 0, %s30
      %s47 = sphi 0, %s31
      %s51 = sphi 0, %s51
      %s53 = sphi 0, %s51
      %s54 = sphi 0, %s53
      %s68 = sphi 0, %s54
      %s72 = sphi 0, %s72
      %s74 = sphi 0, %s72
      %s75 = sphi 0, %s74
      %s89 = sphi 0, %s75
      %s93 = sphi 0, %s93
      %s95 = sphi 0, %s93
      %s96 = sphi 0, %s95
      %s110 = sphi 0, %s96
      %s116 = sphi 0, %s118
      %s119 = sphi 0, %s116
      %s120 = sphi 0, %s119
      %s136 = sphi 0, %s120
    $region4: #{tpu_custom_call.1} parent=1 // loop_header_branch
      %20 = sbr.rel (%p18) target = $region8
    $region5: #{tpu_custom_call.1} parent=1 // loop_body
      %s22 = ssub.s32 %s17, 1
      %s23 = ssub.s32 %s17, 2
      %s24 = sadd.s32 %s17, 1
      %s25 = ssub.s32 %s17, %s24
      %p26 = scmp.eq.s32.totalorder %s25, 0
      %s28 = sadd.s32 %s27, 1
      %s29 = scalar_select %p26, %s27, %s28
      %p32 = pneg %p26
      %p33 = scmp.eq.s32.totalorder %s17, 1
      %p34 = por %p32, %p33
      %p35 = scmp.ne.s32.totalorder %s27, %s30
      %p36 = scmp.eq.s32.totalorder %s17, 0
      %p37 = por %p35, %p36
      %p38 = scmp.ne.s32.totalorder %s27, %s30
      %p39 = scmp.eq.s32.totalorder %s22, 1
      %p40 = por %p38, %p39
      %p41 = scmp.ne.s32.totalorder %s30, %s31
      %p42 = scmp.eq.s32.totalorder %s22, 0
      %p43 = por %p41, %p42
      %p44 = scmp.ne.s32.totalorder %s30, %s31
      %p45 = scmp.eq.s32.totalorder %s23, 1
      %p46 = por %p44, %p45
      %p48 = scmp.ne.s32.totalorder %s31, %s47
      %p49 = scmp.eq.s32.totalorder %s23, 0
      %p50 = por %p48, %p49
      %s52 = sadd.s32 %s51, 1
      %p55 = scmp.eq.s32.totalorder %s17, 1
      %p56 = scmp.ne.s32.totalorder %s51, %s53
      %p57 = scmp.eq.s32.totalorder %s17, 0
      %p58 = por %p56, %p57
      %p59 = scmp.ne.s32.totalorder %s51, %s53
      %p60 = scmp.eq.s32.totalorder %s22, 1
      %p61 = por %p59, %p60
      %p62 = scmp.ne.s32.totalorder %s53, %s54
      %p63 = scmp.eq.s32.totalorder %s22, 0
      %p64 = por %p62, %p63
      %p65 = scmp.ne.s32.totalorder %s53, %s54
      %p66 = scmp.eq.s32.totalorder %s23, 1
      %p67 = por %p65, %p66
      %p69 = scmp.ne.s32.totalorder %s54, %s68
      %p70 = scmp.eq.s32.totalorder %s23, 0
      %p71 = por %p69, %p70
      %s73 = sadd.s32 %s72, 1
      %p76 = scmp.eq.s32.totalorder %s17, 1
      %p77 = scmp.ne.s32.totalorder %s72, %s74
      %p78 = scmp.eq.s32.totalorder %s17, 0
      %p79 = por %p77, %p78
      %p80 = scmp.ne.s32.totalorder %s72, %s74
      %p81 = scmp.eq.s32.totalorder %s22, 1
      %p82 = por %p80, %p81
      %p83 = scmp.ne.s32.totalorder %s74, %s75
      %p84 = scmp.eq.s32.totalorder %s22, 0
      %p85 = por %p83, %p84
      %p86 = scmp.ne.s32.totalorder %s74, %s75
      %p87 = scmp.eq.s32.totalorder %s23, 1
      %p88 = por %p86, %p87
      %p90 = scmp.ne.s32.totalorder %s75, %s89
      %p91 = scmp.eq.s32.totalorder %s23, 0
      %p92 = por %p90, %p91
      %s94 = sadd.s32 %s93, 1
      %p97 = scmp.eq.s32.totalorder %s17, 1
      %p98 = scmp.ne.s32.totalorder %s93, %s95
      %p99 = scmp.eq.s32.totalorder %s17, 0
      %p100 = por %p98, %p99
      %p101 = scmp.ne.s32.totalorder %s93, %s95
      %p102 = scmp.eq.s32.totalorder %s22, 1
      %p103 = por %p101, %p102
      %p104 = scmp.ne.s32.totalorder %s95, %s96
      %p105 = scmp.eq.s32.totalorder %s22, 0
      %p106 = por %p104, %p105
      %p107 = scmp.ne.s32.totalorder %s95, %s96
      %p108 = scmp.eq.s32.totalorder %s23, 1
      %p109 = por %p107, %p108
      %p111 = scmp.ne.s32.totalorder %s96, %s110
      %p112 = scmp.eq.s32.totalorder %s23, 0
      %p113 = por %p111, %p112
      %s114 = ssub.s32 %s17, %s24
      %p115 = scmp.eq.s32.totalorder %s114, 0
      %s117 = sadd.s32 %s116, 1
      %s118 = scalar_select %p115, %s116, %s117
      %p121 = pneg %p115
      %p122 = scmp.eq.s32.totalorder %s17, 1
      %p123 = por %p121, %p122
      %p124 = scmp.ne.s32.totalorder %s116, %s119
      %p125 = scmp.eq.s32.totalorder %s17, 0
      %p126 = por %p124, %p125
      %p127 = scmp.ne.s32.totalorder %s116, %s119
      %p128 = scmp.eq.s32.totalorder %s22, 1
      %p129 = por %p127, %p128
      %p130 = scmp.ne.s32.totalorder %s119, %s120
      %p131 = scmp.eq.s32.totalorder %s22, 0
      %p132 = por %p130, %p131
      %p133 = scmp.ne.s32.totalorder %s119, %s120
      %p134 = scmp.eq.s32.totalorder %s23, 1
      %p135 = por %p133, %p134
      %p137 = scmp.ne.s32.totalorder %s120, %s136
      %p138 = scmp.eq.s32.totalorder %s23, 0
      %p139 = por %p137, %p138
      %p140 = scmp.le.s32.totalorder 1, %s17
      %p141 = scmp.lt.s32.totalorder %s17, 3
      %p142 = pnand %p140, %p141
      %p143 = pneg %p142
      // Predicated region
      $region9: #{tpu_custom_call.1} parent=5 // pred_check
        _
      $region10: #{tpu_custom_call.1} parent=5 // pred_check_branch
        %145 = sbr.rel (%p142) target = $region12
      $region11: #{tpu_custom_call.1} parent=5 // pred_region
        %s146 = ssub.s32 %s17, 1
        // Predicated region
        $region13: #{tpu_custom_call.1} parent=11 // pred_check
          %p147 = pneg %p64
        $region14: #{tpu_custom_call.1} parent=11 // pred_check_branch
          %149 = sbr.rel (%p147) target = $region16
        $region15: #{tpu_custom_call.1} parent=11 // pred_region
          %s151 = ssub.s32 512, 512
          %152 = vsyncadd [#allocation7], %s151
          %s153 = sshll.u32 [#allocation6], 4
          %s154 = int_to_ptr.vmem [resolvable:$true] %s153
          %159 = dma.hbm_to_vmem [thread:$0]  %s1, 512, %s154, [#allocation7], 256, 256, 16
        $region16: #{tpu_custom_call.1} parent=11 // pred_fallthru
          _
        // Predicated region
        $region17: #{tpu_custom_call.1} parent=11 // pred_check
          %p160 = pneg %p85
        $region18: #{tpu_custom_call.1} parent=11 // pred_check_branch
          %162 = sbr.rel (%p160) target = $region20
        $region19: #{tpu_custom_call.1} parent=11 // pred_region
          %s164 = ssub.s32 2048, 2048
          %165 = vsyncadd [#allocation7], %s164
          %s166 = sshll.u32 [#allocation8], 4
          %s167 = int_to_ptr.vmem [resolvable:$true] %s166
          %172 = dma.hbm_to_vmem [thread:$0]  %s2, 2048, %s167, [#allocation7], 256, 256, 16
        $region20: #{tpu_custom_call.1} parent=11 // pred_fallthru
          _
        // Predicated region
        $region21: #{tpu_custom_call.1} parent=11 // pred_check
          %p173 = pneg %p106
        $region22: #{tpu_custom_call.1} parent=11 // pred_check_branch
          %175 = sbr.rel (%p173) target = $region24
        $region23: #{tpu_custom_call.1} parent=11 // pred_region
          _
        $region24: #{tpu_custom_call.1} parent=11 // pred_fallthru
          _
      $region12: #{tpu_custom_call.1} parent=5 // pred_fallthru
        _
      %p176 = scmp.lt.s32.totalorder %s17, 2
      // Predicated region
      $region25: #{tpu_custom_call.1} parent=5 // pred_check
        %p177 = pneg %p176
      $region26: #{tpu_custom_call.1} parent=5 // pred_check_branch
        %179 = sbr.rel (%p177) target = $region28
      $region27: #{tpu_custom_call.1} parent=5 // pred_region
        // Predicated region
        $region29: #{tpu_custom_call.1} parent=27 // pred_check
          %p180 = pneg %p37
        $region30: #{tpu_custom_call.1} parent=27 // pred_check_branch
          %182 = sbr.rel (%p180) target = $region32
        $region31: #{tpu_custom_call.1} parent=27 // pred_region
          %s183 = sand.u32 %s27, 1
          %s184 = scalar_lea.sflag [#allocation4], %s183
          %s185 = sand.u32 %s27, 1
          %s186 = smul.addr %s185, 8
          %s187 = scalar_lea.vmem [#allocation3], %s186
          %s189 = ssub.s32 128, 128
          %190 = vsyncadd %s184, %s189
          %s191 = smul.addr %s17, 128
          %s192 = scalar_lea.hbm %s0, %s191
          %s194 = sshll.u32 %s187, 4
          %s195 = int_to_ptr.vmem [resolvable:$true] %s194
          %197 = dma.hbm_to_vmem [thread:$0]  %s192, 128, %s195, %s184
        $region32: #{tpu_custom_call.1} parent=27 // pred_fallthru
          _
      $region28: #{tpu_custom_call.1} parent=5 // pred_fallthru
        _
      %p198 = scmp.le.s32.totalorder 1, %s17
      %p199 = scmp.lt.s32.totalorder %s17, 3
      %p200 = pnand %p198, %p199
      %p201 = pneg %p200
      // Predicated region
      $region33: #{tpu_custom_call.1} parent=5 // pred_check
        _
      $region34: #{tpu_custom_call.1} parent=5 // pred_check_branch
        %203 = sbr.rel (%p200) target = $region36
      $region35: #{tpu_custom_call.1} parent=5 // pred_region
        %s204 = ssub.s32 %s17, 1
        %s205 = sand.u32 %s30, 1
        %s206 = scalar_lea.sflag [#allocation4], %s205
        %s207 = sand.u32 %s30, 1
        %s208 = smul.addr %s207, 8
        %s209 = scalar_lea.vmem [#allocation3], %s208
        // Predicated region
        $region37: #{tpu_custom_call.1} parent=35 // pred_check
          %p210 = pneg %p43
        $region38: #{tpu_custom_call.1} parent=35 // pred_check_branch
          %212 = sbr.rel (%p210) target = $region40
        $region39: #{tpu_custom_call.1} parent=35 // pred_region
          %213 = dma.done %s206, 128
        $region40: #{tpu_custom_call.1} parent=35 // pred_fallthru
          _
        // Predicated region
        $region41: #{tpu_custom_call.1} parent=35 // pred_check
          %p214 = pneg %p64
        $region42: #{tpu_custom_call.1} parent=35 // pred_check_branch
          %216 = sbr.rel (%p214) target = $region44
        $region43: #{tpu_custom_call.1} parent=35 // pred_region
          %217 = dma.done [#allocation7], 512
        $region44: #{tpu_custom_call.1} parent=35 // pred_fallthru
          _
        // Predicated region
        $region45: #{tpu_custom_call.1} parent=35 // pred_check
          %p218 = pneg %p85
        $region46: #{tpu_custom_call.1} parent=35 // pred_check_branch
          %220 = sbr.rel (%p218) target = $region48
        $region47: #{tpu_custom_call.1} parent=35 // pred_region
          %221 = dma.done [#allocation7], 2048
        $region48: #{tpu_custom_call.1} parent=35 // pred_fallthru
          _
        %s222 = sand.u32 %s30, 1
        %s223 = scalar_lea.sflag [#allocation4], %s222
        %s224 = sand.u32 %s30, 1
        %s225 = smul.addr %s224, 8
        %s226 = scalar_lea.vmem [#allocation3], %s225
        %p227 = pneg %p43
        %p228 = pneg %p40
        %p229 = pneg %p64
        %p230 = pneg %p61
        %p231 = pneg %p85
        %p232 = pneg %p82
        %p233 = pneg %p106
        %p234 = pneg %p103
        %p235 = pneg %p132
        %p236 = pneg %p129
        %s237 = sand.u32 %s119, 1
        %s238 = scalar_lea.sflag [#allocation5], %s237
        %s239 = sand.u32 %s119, 1
        %s240 = smul.addr %s239, 8
        %s241 = scalar_lea.vmem [#allocation9], %s240
        %v242 = vld [vmem:[%s209] sm:$0xff]
        %v243 = vld [vmem:[#allocation6] sm:$0xff]
        %v244 = vld [vmem:[#allocation6 + $0x8] sm:$0xff]
        %v245 = vld [vmem:[#allocation6 + $0x10] sm:$0xff]
        %v246 = vld [vmem:[#allocation6 + $0x18] sm:$0xff]
        %v247 = vld [vmem:[%s3] sm:$0x3]
        %v249 = vlaneseq
        %v250 = vshrl.u32 %v249, 7
        %v251 = vsub.s32 0, %v250
        %v252 = vrot.slane %v247, %v251
        %v253 = vlaneseq
        %v254 = vshrl.u32 %v253, 7
        %v255 = vsub.s32 1, %v254
        %v256 = vrot.slane %v247, %v255
        %vm259 = vcmask 130048
        %v261 = vsel %vm259, %v242, 0
        %263 = vmatprep.subr.mxu0 %v244
        %264 = vmatpush1.msra.mxu0 %v243
        %265 = vmatprep.subr.mxu0 %v246
        %266 = vmatpush1.msra.mxu0 %v245
        %267 = vmatprep.subr.mxu0 0.0
        %268 = vmatpush1.msra.mxu0 0.0
        %269 = vmatprep.subr.mxu0 0.0
        %270 = vmatpush1.msra.mxu0 0.0
        %271 = vmatprep.subr.mxu0 0.0
        %272 = vmatpush1.msra.mxu0 0.0
        %273 = vmatprep.subr.mxu0 0.0
        %274 = vmatpush1.msra.mxu0 0.0
        %275 = vmatprep.subr.mxu0 0.0
        %276 = vmatpush1.msra.mxu0 0.0
        %277 = vmatprep.subr.mxu0 0.0
        %278 = vmatpush1.msra.mxu0 0.0
        %279 = vmatprep.subr.mxu0 0.0
        %280 = vmatpush1.msra.mxu0 0.0
        %281 = vmatprep.subr.mxu0 0.0
        %282 = vmatpush1.msra.mxu0 0.0
        %283 = vmatprep.subr.mxu0 0.0
        %284 = vmatpush1.msra.mxu0 0.0
        %285 = vmatprep.subr.mxu0 0.0
        %286 = vmatpush1.msra.mxu0 0.0
        %287 = vmatprep.subr.mxu0 0.0
        %288 = vmatpush1.msra.mxu0 0.0
        %289 = vmatprep.subr.mxu0 0.0
        %290 = vmatpush1.msra.mxu0 0.0
        %291 = vmatprep.subr.mxu0 0.0
        %292 = vmatpush1.msra.mxu0 0.0
        %293 = vmatprep.subr.mxu0 0.0
        %294 = vmatpush1.msra.mxu0 0.0
        %295 = vmatprep.subr.mxu0 0.0
        %296 = vmatpush1.msra.mxu0 0.0
        %297 = vmatprep.subr.mxu0 0.0
        %298 = vmatpush1.msra.mxu0 0.0
        %299 = vmatprep.subr.mxu0 0.0
        %300 = vmatpush1.msra.mxu0 0.0
        %301 = vmatprep.subr.mxu0 0.0
        %302 = vmatpush1.msra.mxu0 0.0
        %303 = vmatprep.subr.mxu0 0.0
        %304 = vmatpush1.msra.mxu0 0.0
        %305 = vmatprep.subr.mxu0 0.0
        %306 = vmatpush1.msra.mxu0 0.0
        %307 = vmatprep.subr.mxu0 0.0
        %308 = vmatpush1.msra.mxu0 0.0
        %309 = vmatprep.subr.mxu0 0.0
        %310 = vmatpush1.msra.mxu0 0.0
        %311 = vmatprep.subr.mxu0 0.0
        %312 = vmatpush1.msra.mxu0 0.0
        %313 = vmatprep.subr.mxu0 0.0
        %314 = vmatpush1.msra.mxu0 0.0
        %315 = vmatprep.subr.mxu0 0.0
        %316 = vmatpush1.msra.mxu0 0.0
        %317 = vmatprep.subr.mxu0 0.0
        %318 = vmatpush1.msra.mxu0 0.0
        %319 = vmatprep.subr.mxu0 0.0
        %320 = vmatpush1.msra.mxu0 0.0
        %321 = vmatprep.subr.mxu0 0.0
        %322 = vmatpush1.msra.mxu0 0.0
        %323 = vmatprep.subr.mxu0 0.0
        %324 = vmatpush1.msra.mxu0 0.0
        %325 = vmatprep.subr.mxu0 0.0
        %326 = vmatpush1.msra.mxu0 0.0
        %327 = vmatprep.mubr.f32.mxu0 0.0
        %328 = vmatmul.mubr.f32.gmra.mrb[0].mxu0 %v261
        %v329 = vpop.f32.mrb[0].mxu0
        %v330 = vadd.f32 %v252, %v329
        %v331 = vpop.f32.mrb[0].mxu0
        %v332 = vadd.f32 %v256, %v331
        %333 = vdwg.mxu0
        %334 = vst [vmem:[#allocation2] sm:$0xff] %v330
        %335 = vst [vmem:[#allocation2 + $0x8] sm:$0xff] %v332
        %v336 = vld [vmem:[#allocation8] sm:$0xff]
        %v337 = vld [vmem:[#allocation8 + $0x8] sm:$0xff]
        %v338 = vld [vmem:[#allocation8 + $0x10] sm:$0xff]
        %v339 = vld [vmem:[#allocation8 + $0x18] sm:$0xff]
        %v340 = vld [vmem:[#allocation8 + $0x20] sm:$0xff]
        %v341 = vld [vmem:[#allocation8 + $0x28] sm:$0xff]
        %v342 = vld [vmem:[#allocation8 + $0x30] sm:$0xff]
        %v343 = vld [vmem:[#allocation8 + $0x38] sm:$0xff]
        %v344 = vld [vmem:[#allocation8 + $0x40] sm:$0xff]
        %v345 = vld [vmem:[#allocation8 + $0x48] sm:$0xff]
        %v346 = vld [vmem:[#allocation8 + $0x50] sm:$0xff]
        %v347 = vld [vmem:[#allocation8 + $0x58] sm:$0xff]
        %v348 = vld [vmem:[#allocation8 + $0x60] sm:$0xff]
        %v349 = vld [vmem:[#allocation8 + $0x68] sm:$0xff]
        %v350 = vld [vmem:[#allocation8 + $0x70] sm:$0xff]
        %v351 = vld [vmem:[#allocation8 + $0x78] sm:$0xff]
        %vm352 = vcmask 523264
        %v354 = vsel %vm352, 0.0, 0
        %356 = vmatprep.subr.mxu0 %v337
        %357 = vmatpush1.msra.mxu0 %v336
        %358 = vmatprep.subr.mxu0 %v339
        %359 = vmatpush1.msra.mxu0 %v338
        %360 = vmatprep.subr.mxu0 %v341
        %361 = vmatpush1.msra.mxu0 %v340
        %362 = vmatprep.subr.mxu0 %v343
        %363 = vmatpush1.msra.mxu0 %v342
        %364 = vmatprep.subr.mxu0 %v345
        %365 = vmatpush1.msra.mxu0 %v344
        %366 = vmatprep.subr.mxu0 %v347
        %367 = vmatpush1.msra.mxu0 %v346
        %368 = vmatprep.subr.mxu0 %v349
        %369 = vmatpush1.msra.mxu0 %v348
        %370 = vmatprep.subr.mxu0 %v351
        %371 = vmatpush1.msra.mxu0 %v350
        %372 = vmatprep.subr.mxu0 0.0
        %373 = vmatpush1.msra.mxu0 0.0
        %374 = vmatprep.subr.mxu0 0.0
        %375 = vmatpush1.msra.mxu0 0.0
        %376 = vmatprep.subr.mxu0 0.0
        %377 = vmatpush1.msra.mxu0 0.0
        %378 = vmatprep.subr.mxu0 0.0
        %379 = vmatpush1.msra.mxu0 0.0
        %380 = vmatprep.subr.mxu0 0.0
        %381 = vmatpush1.msra.mxu0 0.0
        %382 = vmatprep.subr.mxu0 0.0
        %383 = vmatpush1.msra.mxu0 0.0
        %384 = vmatprep.subr.mxu0 0.0
        %385 = vmatpush1.msra.mxu0 0.0
        %386 = vmatprep.subr.mxu0 0.0
        %387 = vmatpush1.msra.mxu0 0.0
        %388 = vmatprep.subr.mxu0 0.0
        %389 = vmatpush1.msra.mxu0 0.0
        %390 = vmatprep.subr.mxu0 0.0
        %391 = vmatpush1.msra.mxu0 0.0
        %392 = vmatprep.subr.mxu0 0.0
        %393 = vmatpush1.msra.mxu0 0.0
        %394 = vmatprep.subr.mxu0 0.0
        %395 = vmatpush1.msra.mxu0 0.0
        %396 = vmatprep.subr.mxu0 0.0
        %397 = vmatpush1.msra.mxu0 0.0
        %398 = vmatprep.subr.mxu0 0.0
        %399 = vmatpush1.msra.mxu0 0.0
        %400 = vmatprep.subr.mxu0 0.0
        %401 = vmatpush1.msra.mxu0 0.0
        %402 = vmatprep.subr.mxu0 0.0
        %403 = vmatpush1.msra.mxu0 0.0
        %404 = vmatprep.subr.mxu0 0.0
        %405 = vmatpush1.msra.mxu0 0.0
        %406 = vmatprep.subr.mxu0 0.0
        %407 = vmatpush1.msra.mxu0 0.0
        %408 = vmatprep.subr.mxu0 0.0
        %409 = vmatpush1.msra.mxu0 0.0
        %410 = vmatprep.subr.mxu0 0.0
        %411 = vmatpush1.msra.mxu0 0.0
        %412 = vmatprep.subr.mxu0 0.0
        %413 = vmatpush1.msra.mxu0 0.0
        %414 = vmatprep.subr.mxu0 0.0
        %415 = vmatpush1.msra.mxu0 0.0
        %416 = vmatprep.subr.mxu0 0.0
        %417 = vmatpush1.msra.mxu0 0.0
        %418 = vmatprep.subr.mxu0 0.0
        %419 = vmatpush1.msra.mxu0 0.0
        %420 = vmatprep.mubr.f32.mxu0 0.0
        %421 = vmatmul.mubr.f32.gmra.mrb[0].mxu0 %v354
        %v422 = vpop.f32.mrb[0].mxu0
        %v423 = vadd.f32 0.0, %v422
        %v424 = vpop.f32.mrb[0].mxu0
        %v425 = vadd.f32 0.0, %v424
        %426 = vdwg.mxu0
        %v427 = vld [vmem:[#allocation2] ss:$0 sm:$0xff]
        %v428 = vadd.f32 %v423, %v427
        %v429 = vld [vmem:[#allocation2 + $0xf] ss:$0 sm:$0xff]
        %v430 = vadd.f32 %v425, %v429
        %v431 = vxor.u32 %v428, 2147483648
        %v432 = vmul.f32 %v431, 1.442695
        %v433 = vpow.pop %v432
        %v434 = vadd.f32 %v433, 1.0
        %v435 = vrcp.pop %v434
        %v436 = vmul.f32 1.0, %v435
        %v437 = vtanh.pop %v428
        %v438 = vmul.f32 %v436, 0.0
        %440 = vrot.lane.b32.xlu0 %v437, 32
        %v441 = vpop.permute.xlu0 %440
        %v443 = vmul.f32 %v436, %v441
        %445 = vrot.lane.b32.xlu0 %v443, 32
        %v446 = vpop.permute.xlu0 %445
        %v448 = vadd.f32 %v438, %v446
        %v449 = vtanh.pop %v448
        %451 = vrot.lane.b32.xlu0 %v449, 32
        %v452 = vpop.permute.xlu0 %451
        %v454 = vmul.f32 %v436, %v452
        %v455 = vxor.u32 %v430, 2147483648
        %v456 = vmul.f32 %v455, 1.442695
        %v457 = vpow.pop %v456
        %v458 = vadd.f32 %v457, 1.0
        %v459 = vrcp.pop %v458
        %v460 = vmul.f32 1.0, %v459
        %v461 = vtanh.pop %v430
        %v462 = vmul.f32 %v460, 0.0
        %464 = vrot.lane.b32.xlu0 %v461, 32
        %v465 = vpop.permute.xlu0 %464
        %v467 = vmul.f32 %v460, %v465
        %469 = vrot.lane.b32.xlu0 %v467, 32
        %v470 = vpop.permute.xlu0 %469
        %v472 = vadd.f32 %v462, %v470
        %v473 = vtanh.pop %v472
        %475 = vrot.lane.b32.xlu0 %v473, 32
        %v476 = vpop.permute.xlu0 %475
        %v478 = vmul.f32 %v460, %v476
        %480 = vrot.lane.b32.xlu0 %v454, 64
        %v481 = vpop.permute.xlu0 %480
        %484 = vrot.lane.b32.xlu0 %v478, 96
        %v485 = vpop.permute.xlu0 %484
        %vm487 = vcmask 261120
        %v488 = vsel %vm487, %v481, %v485
        %v490 = vsel %vm352, %v488, 0
        %492 = vmatprep.subr.mxu0 %v337
        %493 = vmatpush1.msra.mxu0 %v336
        %494 = vmatprep.subr.mxu0 %v339
        %495 = vmatpush1.msra.mxu0 %v338
        %496 = vmatprep.subr.mxu0 %v341
        %497 = vmatpush1.msra.mxu0 %v340
        %498 = vmatprep.subr.mxu0 %v343
        %499 = vmatpush1.msra.mxu0 %v342
        %500 = vmatprep.subr.mxu0 %v345
        %501 = vmatpush1.msra.mxu0 %v344
        %502 = vmatprep.subr.mxu0 %v347
        %503 = vmatpush1.msra.mxu0 %v346
        %504 = vmatprep.subr.mxu0 %v349
        %505 = vmatpush1.msra.mxu0 %v348
        %506 = vmatprep.subr.mxu0 %v351
        %507 = vmatpush1.msra.mxu0 %v350
        %508 = vmatprep.subr.mxu0 0.0
        %509 = vmatpush1.msra.mxu0 0.0
        %510 = vmatprep.subr.mxu0 0.0
        %511 = vmatpush1.msra.mxu0 0.0
        %512 = vmatprep.subr.mxu0 0.0
        %513 = vmatpush1.msra.mxu0 0.0
        %514 = vmatprep.subr.mxu0 0.0
        %515 = vmatpush1.msra.mxu0 0.0
        %516 = vmatprep.subr.mxu0 0.0
        %517 = vmatpush1.msra.mxu0 0.0
        %518 = vmatprep.subr.mxu0 0.0
        %519 = vmatpush1.msra.mxu0 0.0
        %520 = vmatprep.subr.mxu0 0.0
        %521 = vmatpush1.msra.mxu0 0.0
        %522 = vmatprep.subr.mxu0 0.0
        %523 = vmatpush1.msra.mxu0 0.0
        %524 = vmatprep.subr.mxu0 0.0
        %525 = vmatpush1.msra.mxu0 0.0
        %526 = vmatprep.subr.mxu0 0.0
        %527 = vmatpush1.msra.mxu0 0.0
        %528 = vmatprep.subr.mxu0 0.0
        %529 = vmatpush1.msra.mxu0 0.0
        %530 = vmatprep.subr.mxu0 0.0
        %531 = vmatpush1.msra.mxu0 0.0
        %532 = vmatprep.subr.mxu0 0.0
        %533 = vmatpush1.msra.mxu0 0.0
        %534 = vmatprep.subr.mxu0 0.0
        %535 = vmatpush1.msra.mxu0 0.0
        %536 = vmatprep.subr.mxu0 0.0
        %537 = vmatpush1.msra.mxu0 0.0
        %538 = vmatprep.subr.mxu0 0.0
        %539 = vmatpush1.msra.mxu0 0.0
        %540 = vmatprep.subr.mxu0 0.0
        %541 = vmatpush1.msra.mxu0 0.0
        %542 = vmatprep.subr.mxu0 0.0
        %543 = vmatpush1.msra.mxu0 0.0
        %544 = vmatprep.subr.mxu0 0.0
        %545 = vmatpush1.msra.mxu0 0.0
        %546 = vmatprep.subr.mxu0 0.0
        %547 = vmatpush1.msra.mxu0 0.0
        %548 = vmatprep.subr.mxu0 0.0
        %549 = vmatpush1.msra.mxu0 0.0
        %550 = vmatprep.subr.mxu0 0.0
        %551 = vmatpush1.msra.mxu0 0.0
        %552 = vmatprep.subr.mxu0 0.0
        %553 = vmatpush1.msra.mxu0 0.0
        %554 = vmatprep.subr.mxu0 0.0
        %555 = vmatpush1.msra.mxu0 0.0
        %556 = vmatprep.mubr.f32.mxu0 0.0
        %557 = vmatmul.mubr.f32.gmra.mrb[0].mxu0 %v490
        %v558 = vpop.f32.mrb[0].mxu0
        %v559 = vadd.f32 0.0, %v558
        %v560 = vpop.f32.mrb[0].mxu0
        %v561 = vadd.f32 0.0, %v560
        %562 = vdwg.mxu0
        %v563 = vld [vmem:[#allocation2 + $0x1] ss:$0 sm:$0xff]
        %v564 = vadd.f32 %v559, %v563
        %v565 = vld [vmem:[#allocation2 + $0xe] ss:$0 sm:$0xff]
        %v566 = vadd.f32 %v561, %v565
        %v567 = vxor.u32 %v564, 2147483648
        %v568 = vmul.f32 %v567, 1.442695
        %v569 = vpow.pop %v568
        %v570 = vadd.f32 %v569, 1.0
        %v571 = vrcp.pop %v570
        %v572 = vmul.f32 1.0, %v571
        %v573 = vtanh.pop %v564
        %v574 = vmul.f32 %v572, %v448
        %576 = vrot.lane.b32.xlu0 %v573, 32
        %v577 = vpop.permute.xlu0 %576
        %v579 = vmul.f32 %v572, %v577
        %581 = vrot.lane.b32.xlu0 %v579, 32
        %v582 = vpop.permute.xlu0 %581
        %v584 = vadd.f32 %v574, %v582
        %v585 = vtanh.pop %v584
        %587 = vrot.lane.b32.xlu0 %v585, 32
        %v588 = vpop.permute.xlu0 %587
        %v590 = vmul.f32 %v572, %v588
        %v591 = vxor.u32 %v566, 2147483648
        %v592 = vmul.f32 %v591, 1.442695
        %v593 = vpow.pop %v592
        %v594 = vadd.f32 %v593, 1.0
        %v595 = vrcp.pop %v594
        %v596 = vmul.f32 1.0, %v595
        %v597 = vtanh.pop %v566
        %v598 = vmul.f32 %v596, %v472
        %600 = vrot.lane.b32.xlu0 %v597, 32
        %v601 = vpop.permute.xlu0 %600
        %v603 = vmul.f32 %v596, %v601
        %605 = vrot.lane.b32.xlu0 %v603, 32
        %v606 = vpop.permute.xlu0 %605
        %v608 = vadd.f32 %v598, %v606
        %v609 = vtanh.pop %v608
        %611 = vrot.lane.b32.xlu0 %v609, 32
        %v612 = vpop.permute.xlu0 %611
        %v614 = vmul.f32 %v596, %v612
        %616 = vrot.lane.b32.xlu0 %v590, 64
        %v617 = vpop.permute.xlu0 %616
        %620 = vrot.lane.b32.xlu0 %v614, 96
        %v621 = vpop.permute.xlu0 %620
        %v623 = vsel %vm487, %v617, %v621
        %v625 = vsel %vm352, %v623, 0
        %627 = vmatprep.subr.mxu0 %v337
        %628 = vmatpush1.msra.mxu0 %v336
        %629 = vmatprep.subr.mxu0 %v339
        %630 = vmatpush1.msra.mxu0 %v338
        %631 = vmatprep.subr.mxu0 %v341
        %632 = vmatpush1.msra.mxu0 %v340
        %633 = vmatprep.subr.mxu0 %v343
        %634 = vmatpush1.msra.mxu0 %v342
        %635 = vmatprep.subr.mxu0 %v345
        %636 = vmatpush1.msra.mxu0 %v344
        %637 = vmatprep.subr.mxu0 %v347
        %638 = vmatpush1.msra.mxu0 %v346
        %639 = vmatprep.subr.mxu0 %v349
        %640 = vmatpush1.msra.mxu0 %v348
        %641 = vmatprep.subr.mxu0 %v351
        %642 = vmatpush1.msra.mxu0 %v350
        %643 = vmatprep.subr.mxu0 0.0
        %644 = vmatpush1.msra.mxu0 0.0
        %645 = vmatprep.subr.mxu0 0.0
        %646 = vmatpush1.msra.mxu0 0.0
        %647 = vmatprep.subr.mxu0 0.0
        %648 = vmatpush1.msra.mxu0 0.0
        %649 = vmatprep.subr.mxu0 0.0
        %650 = vmatpush1.msra.mxu0 0.0
        %651 = vmatprep.subr.mxu0 0.0
        %652 = vmatpush1.msra.mxu0 0.0
        %653 = vmatprep.subr.mxu0 0.0
        %654 = vmatpush1.msra.mxu0 0.0
        %655 = vmatprep.subr.mxu0 0.0
        %656 = vmatpush1.msra.mxu0 0.0
        %657 = vmatprep.subr.mxu0 0.0
        %658 = vmatpush1.msra.mxu0 0.0
        %659 = vmatprep.subr.mxu0 0.0
        %660 = vmatpush1.msra.mxu0 0.0
        %661 = vmatprep.subr.mxu0 0.0
        %662 = vmatpush1.msra.mxu0 0.0
        %663 = vmatprep.subr.mxu0 0.0
        %664 = vmatpush1.msra.mxu0 0.0
        %665 = vmatprep.subr.mxu0 0.0
        %666 = vmatpush1.msra.mxu0 0.0
        %667 = vmatprep.subr.mxu0 0.0
        %668 = vmatpush1.msra.mxu0 0.0
        %669 = vmatprep.subr.mxu0 0.0
        %670 = vmatpush1.msra.mxu0 0.0
        %671 = vmatprep.subr.mxu0 0.0
        %672 = vmatpush1.msra.mxu0 0.0
        %673 = vmatprep.subr.mxu0 0.0
        %674 = vmatpush1.msra.mxu0 0.0
        %675 = vmatprep.subr.mxu0 0.0
        %676 = vmatpush1.msra.mxu0 0.0
        %677 = vmatprep.subr.mxu0 0.0
        %678 = vmatpush1.msra.mxu0 0.0
        %679 = vmatprep.subr.mxu0 0.0
        %680 = vmatpush1.msra.mxu0 0.0
        %681 = vmatprep.subr.mxu0 0.0
        %682 = vmatpush1.msra.mxu0 0.0
        %683 = vmatprep.subr.mxu0 0.0
        %684 = vmatpush1.msra.mxu0 0.0
        %685 = vmatprep.subr.mxu0 0.0
        %686 = vmatpush1.msra.mxu0 0.0
        %687 = vmatprep.subr.mxu0 0.0
        %688 = vmatpush1.msra.mxu0 0.0
        %689 = vmatprep.subr.mxu0 0.0
        %690 = vmatpush1.msra.mxu0 0.0
        %691 = vmatprep.mubr.f32.mxu0 0.0
        %692 = vmatmul.mubr.f32.gmra.mrb[0].mxu0 %v625
        %v693 = vpop.f32.mrb[0].mxu0
        %v694 = vadd.f32 0.0, %v693
        %v695 = vpop.f32.mrb[0].mxu0
        %v696 = vadd.f32 0.0, %v695
        %697 = vdwg.mxu0
        %v698 = vld [vmem:[#allocation2 + $0x2] ss:$0 sm:$0xff]
        %v699 = vadd.f32 %v694, %v698
        %v700 = vld [vmem:[#allocation2 + $0xd] ss:$0 sm:$0xff]
        %v701 = vadd.f32 %v696, %v700
        %v702 = vxor.u32 %v699, 2147483648
        %v703 = vmul.f32 %v702, 1.442695
        %v704 = vpow.pop %v703
        %v705 = vadd.f32 %v704, 1.0
        %v706 = vrcp.pop %v705
        %v707 = vmul.f32 1.0, %v706
        %v708 = vtanh.pop %v699
        %v709 = vmul.f32 %v707, %v584
        %711 = vrot.lane.b32.xlu0 %v708, 32
        %v712 = vpop.permute.xlu0 %711
        %v714 = vmul.f32 %v707, %v712
        %716 = vrot.lane.b32.xlu0 %v714, 32
        %v717 = vpop.permute.xlu0 %716
        %v719 = vadd.f32 %v709, %v717
        %v720 = vtanh.pop %v719
        %722 = vrot.lane.b32.xlu0 %v720, 32
        %v723 = vpop.permute.xlu0 %722
        %v725 = vmul.f32 %v707, %v723
        %v726 = vxor.u32 %v701, 2147483648
        %v727 = vmul.f32 %v726, 1.442695
        %v728 = vpow.pop %v727
        %v729 = vadd.f32 %v728, 1.0
        %v730 = vrcp.pop %v729
        %v731 = vmul.f32 1.0, %v730
        %v732 = vtanh.pop %v701
        %v733 = vmul.f32 %v731, %v608
        %735 = vrot.lane.b32.xlu0 %v732, 32
        %v736 = vpop.permute.xlu0 %735
        %v738 = vmul.f32 %v731, %v736
        %740 = vrot.lane.b32.xlu0 %v738, 32
        %v741 = vpop.permute.xlu0 %740
        %v743 = vadd.f32 %v733, %v741
        %v744 = vtanh.pop %v743
        %746 = vrot.lane.b32.xlu0 %v744, 32
        %v747 = vpop.permute.xlu0 %746
        %v749 = vmul.f32 %v731, %v747
        %751 = vrot.lane.b32.xlu0 %v725, 64
        %v752 = vpop.permute.xlu0 %751
        %755 = vrot.lane.b32.xlu0 %v749, 96
        %v756 = vpop.permute.xlu0 %755
        %v758 = vsel %vm487, %v752, %v756
        %v760 = vsel %vm352, %v758, 0
        %762 = vmatprep.subr.mxu0 %v337
        %763 = vmatpush1.msra.mxu0 %v336
        %764 = vmatprep.subr.mxu0 %v339
        %765 = vmatpush1.msra.mxu0 %v338
        %766 = vmatprep.subr.mxu0 %v341
        %767 = vmatpush1.msra.mxu0 %v340
        %768 = vmatprep.subr.mxu0 %v343
        %769 = vmatpush1.msra.mxu0 %v342
        %770 = vmatprep.subr.mxu0 %v345
        %771 = vmatpush1.msra.mxu0 %v344
        %772 = vmatprep.subr.mxu0 %v347
        %773 = vmatpush1.msra.mxu0 %v346
        %774 = vmatprep.subr.mxu0 %v349
        %775 = vmatpush1.msra.mxu0 %v348
        %776 = vmatprep.subr.mxu0 %v351
        %777 = vmatpush1.msra.mxu0 %v350
        %778 = vmatprep.subr.mxu0 0.0
        %779 = vmatpush1.msra.mxu0 0.0
        %780 = vmatprep.subr.mxu0 0.0
        %781 = vmatpush1.msra.mxu0 0.0
        %782 = vmatprep.subr.mxu0 0.0
        %783 = vmatpush1.msra.mxu0 0.0
        %784 = vmatprep.subr.mxu0 0.0
        %785 = vmatpush1.msra.mxu0 0.0
        %786 = vmatprep.subr.mxu0 0.0
        %787 = vmatpush1.msra.mxu0 0.0
        %788 = vmatprep.subr.mxu0 0.0
        %789 = vmatpush1.msra.mxu0 0.0
        %790 = vmatprep.subr.mxu0 0.0
        %791 = vmatpush1.msra.mxu0 0.0
        %792 = vmatprep.subr.mxu0 0.0
        %793 = vmatpush1.msra.mxu0 0.0
        %794 = vmatprep.subr.mxu0 0.0
        %795 = vmatpush1.msra.mxu0 0.0
        %796 = vmatprep.subr.mxu0 0.0
        %797 = vmatpush1.msra.mxu0 0.0
        %798 = vmatprep.subr.mxu0 0.0
        %799 = vmatpush1.msra.mxu0 0.0
        %800 = vmatprep.subr.mxu0 0.0
        %801 = vmatpush1.msra.mxu0 0.0
        %802 = vmatprep.subr.mxu0 0.0
        %803 = vmatpush1.msra.mxu0 0.0
        %804 = vmatprep.subr.mxu0 0.0
        %805 = vmatpush1.msra.mxu0 0.0
        %806 = vmatprep.subr.mxu0 0.0
        %807 = vmatpush1.msra.mxu0 0.0
        %808 = vmatprep.subr.mxu0 0.0
        %809 = vmatpush1.msra.mxu0 0.0
        %810 = vmatprep.subr.mxu0 0.0
        %811 = vmatpush1.msra.mxu0 0.0
        %812 = vmatprep.subr.mxu0 0.0
        %813 = vmatpush1.msra.mxu0 0.0
        %814 = vmatprep.subr.mxu0 0.0
        %815 = vmatpush1.msra.mxu0 0.0
        %816 = vmatprep.subr.mxu0 0.0
        %817 = vmatpush1.msra.mxu0 0.0
        %818 = vmatprep.subr.mxu0 0.0
        %819 = vmatpush1.msra.mxu0 0.0
        %820 = vmatprep.subr.mxu0 0.0
        %821 = vmatpush1.msra.mxu0 0.0
        %822 = vmatprep.subr.mxu0 0.0
        %823 = vmatpush1.msra.mxu0 0.0
        %824 = vmatprep.subr.mxu0 0.0
        %825 = vmatpush1.msra.mxu0 0.0
        %826 = vmatprep.mubr.f32.mxu0 0.0
        %827 = vmatmul.mubr.f32.gmra.mrb[0].mxu0 %v760
        %v828 = vpop.f32.mrb[0].mxu0
        %v829 = vadd.f32 0.0, %v828
        %v830 = vpop.f32.mrb[0].mxu0
        %v831 = vadd.f32 0.0, %v830
        %832 = vdwg.mxu0
        %v833 = vld [vmem:[#allocation2 + $0x3] ss:$0 sm:$0xff]
        %v834 = vadd.f32 %v829, %v833
        %v835 = vld [vmem:[#allocation2 + $0xc] ss:$0 sm:$0xff]
        %v836 = vadd.f32 %v831, %v835
        %v837 = vxor.u32 %v834, 2147483648
        %v838 = vmul.f32 %v837, 1.442695
        %v839 = vpow.pop %v838
        %v840 = vadd.f32 %v839, 1.0
        %v841 = vrcp.pop %v840
        %v842 = vmul.f32 1.0, %v841
        %v843 = vtanh.pop %v834
        %v844 = vmul.f32 %v842, %v719
        %846 = vrot.lane.b32.xlu0 %v843, 32
        %v847 = vpop.permute.xlu0 %846
        %v849 = vmul.f32 %v842, %v847
        %851 = vrot.lane.b32.xlu0 %v849, 32
        %v852 = vpop.permute.xlu0 %851
        %v854 = vadd.f32 %v844, %v852
        %v855 = vtanh.pop %v854
        %857 = vrot.lane.b32.xlu0 %v855, 32
        %v858 = vpop.permute.xlu0 %857
        %v860 = vmul.f32 %v842, %v858
        %v861 = vxor.u32 %v836, 2147483648
        %v862 = vmul.f32 %v861, 1.442695
        %v863 = vpow.pop %v862
        %v864 = vadd.f32 %v863, 1.0
        %v865 = vrcp.pop %v864
        %v866 = vmul.f32 1.0, %v865
        %v867 = vtanh.pop %v836
        %v868 = vmul.f32 %v866, %v743
        %870 = vrot.lane.b32.xlu0 %v867, 32
        %v871 = vpop.permute.xlu0 %870
        %v873 = vmul.f32 %v866, %v871
        %875 = vrot.lane.b32.xlu0 %v873, 32
        %v876 = vpop.permute.xlu0 %875
        %v878 = vadd.f32 %v868, %v876
        %v879 = vtanh.pop %v878
        %881 = vrot.lane.b32.xlu0 %v879, 32
        %v882 = vpop.permute.xlu0 %881
        %v884 = vmul.f32 %v866, %v882
        %886 = vrot.lane.b32.xlu0 %v860, 64
        %v887 = vpop.permute.xlu0 %886
        %890 = vrot.lane.b32.xlu0 %v884, 96
        %v891 = vpop.permute.xlu0 %890
        %v893 = vsel %vm487, %v887, %v891
        %v895 = vsel %vm352, %v893, 0
        %897 = vmatprep.subr.mxu0 %v337
        %898 = vmatpush1.msra.mxu0 %v336
        %899 = vmatprep.subr.mxu0 %v339
        %900 = vmatpush1.msra.mxu0 %v338
        %901 = vmatprep.subr.mxu0 %v341
        %902 = vmatpush1.msra.mxu0 %v340
        %903 = vmatprep.subr.mxu0 %v343
        %904 = vmatpush1.msra.mxu0 %v342
        %905 = vmatprep.subr.mxu0 %v345
        %906 = vmatpush1.msra.mxu0 %v344
        %907 = vmatprep.subr.mxu0 %v347
        %908 = vmatpush1.msra.mxu0 %v346
        %909 = vmatprep.subr.mxu0 %v349
        %910 = vmatpush1.msra.mxu0 %v348
        %911 = vmatprep.subr.mxu0 %v351
        %912 = vmatpush1.msra.mxu0 %v350
        %913 = vmatprep.subr.mxu0 0.0
        %914 = vmatpush1.msra.mxu0 0.0
        %915 = vmatprep.subr.mxu0 0.0
        %916 = vmatpush1.msra.mxu0 0.0
        %917 = vmatprep.subr.mxu0 0.0
        %918 = vmatpush1.msra.mxu0 0.0
        %919 = vmatprep.subr.mxu0 0.0
        %920 = vmatpush1.msra.mxu0 0.0
        %921 = vmatprep.subr.mxu0 0.0
        %922 = vmatpush1.msra.mxu0 0.0
        %923 = vmatprep.subr.mxu0 0.0
        %924 = vmatpush1.msra.mxu0 0.0
        %925 = vmatprep.subr.mxu0 0.0
        %926 = vmatpush1.msra.mxu0 0.0
        %927 = vmatprep.subr.mxu0 0.0
        %928 = vmatpush1.msra.mxu0 0.0
        %929 = vmatprep.subr.mxu0 0.0
        %930 = vmatpush1.msra.mxu0 0.0
        %931 = vmatprep.subr.mxu0 0.0
        %932 = vmatpush1.msra.mxu0 0.0
        %933 = vmatprep.subr.mxu0 0.0
        %934 = vmatpush1.msra.mxu0 0.0
        %935 = vmatprep.subr.mxu0 0.0
        %936 = vmatpush1.msra.mxu0 0.0
        %937 = vmatprep.subr.mxu0 0.0
        %938 = vmatpush1.msra.mxu0 0.0
        %939 = vmatprep.subr.mxu0 0.0
        %940 = vmatpush1.msra.mxu0 0.0
        %941 = vmatprep.subr.mxu0 0.0
        %942 = vmatpush1.msra.mxu0 0.0
        %943 = vmatprep.subr.mxu0 0.0
        %944 = vmatpush1.msra.mxu0 0.0
        %945 = vmatprep.subr.mxu0 0.0
        %946 = vmatpush1.msra.mxu0 0.0
        %947 = vmatprep.subr.mxu0 0.0
        %948 = vmatpush1.msra.mxu0 0.0
        %949 = vmatprep.subr.mxu0 0.0
        %950 = vmatpush1.msra.mxu0 0.0
        %951 = vmatprep.subr.mxu0 0.0
        %952 = vmatpush1.msra.mxu0 0.0
        %953 = vmatprep.subr.mxu0 0.0
        %954 = vmatpush1.msra.mxu0 0.0
        %955 = vmatprep.subr.mxu0 0.0
        %956 = vmatpush1.msra.mxu0 0.0
        %957 = vmatprep.subr.mxu0 0.0
        %958 = vmatpush1.msra.mxu0 0.0
        %959 = vmatprep.subr.mxu0 0.0
        %960 = vmatpush1.msra.mxu0 0.0
        %961 = vmatprep.mubr.f32.mxu0 0.0
        %962 = vmatmul.mubr.f32.gmra.mrb[0].mxu0 %v895
        %v963 = vpop.f32.mrb[0].mxu0
        %v964 = vadd.f32 0.0, %v963
        %v965 = vpop.f32.mrb[0].mxu0
        %v966 = vadd.f32 0.0, %v965
        %967 = vdwg.mxu0
        %v968 = vld [vmem:[#allocation2 + $0x4] ss:$0 sm:$0xff]
        %v969 = vadd.f32 %v964, %v968
        %v970 = vld [vmem:[#allocation2 + $0xb] ss:$0 sm:$0xff]
        %v971 = vadd.f32 %v966, %v970
        %v972 = vxor.u32 %v969, 2147483648
        %v973 = vmul.f32 %v972, 1.442695
        %v974 = vpow.pop %v973
        %v975 = vadd.f32 %v974, 1.0
        %v976 = vrcp.pop %v975
        %v977 = vmul.f32 1.0, %v976
        %v978 = vtanh.pop %v969
        %v979 = vmul.f32 %v977, %v854
        %981 = vrot.lane.b32.xlu0 %v978, 32
        %v982 = vpop.permute.xlu0 %981
        %v984 = vmul.f32 %v977, %v982
        %986 = vrot.lane.b32.xlu0 %v984, 32
        %v987 = vpop.permute.xlu0 %986
        %v989 = vadd.f32 %v979, %v987
        %v990 = vtanh.pop %v989
        %992 = vrot.lane.b32.xlu0 %v990, 32
        %v993 = vpop.permute.xlu0 %992
        %v995 = vmul.f32 %v977, %v993
        %v996 = vxor.u32 %v971, 2147483648
        %v997 = vmul.f32 %v996, 1.442695
        %v998 = vpow.pop %v997
        %v999 = vadd.f32 %v998, 1.0
        %v1000 = vrcp.pop %v999
        %v1001 = vmul.f32 1.0, %v1000
        %v1002 = vtanh.pop %v971
        %v1003 = vmul.f32 %v1001, %v878
        %1005 = vrot.lane.b32.xlu0 %v1002, 32
        %v1006 = vpop.permute.xlu0 %1005
        %v1008 = vmul.f32 %v1001, %v1006
        %1010 = vrot.lane.b32.xlu0 %v1008, 32
        %v1011 = vpop.permute.xlu0 %1010
        %v1013 = vadd.f32 %v1003, %v1011
        %v1014 = vtanh.pop %v1013
        %1016 = vrot.lane.b32.xlu0 %v1014, 32
        %v1017 = vpop.permute.xlu0 %1016
        %v1019 = vmul.f32 %v1001, %v1017
        %1021 = vrot.lane.b32.xlu0 %v995, 64
        %v1022 = vpop.permute.xlu0 %1021
        %1025 = vrot.lane.b32.xlu0 %v1019, 96
        %v1026 = vpop.permute.xlu0 %1025
        %v1028 = vsel %vm487, %v1022, %v1026
        %v1030 = vsel %vm352, %v1028, 0
        %1032 = vmatprep.subr.mxu0 %v337
        %1033 = vmatpush1.msra.mxu0 %v336
        %1034 = vmatprep.subr.mxu0 %v339
        %1035 = vmatpush1.msra.mxu0 %v338
        %1036 = vmatprep.subr.mxu0 %v341
        %1037 = vmatpush1.msra.mxu0 %v340
        %1038 = vmatprep.subr.mxu0 %v343
        %1039 = vmatpush1.msra.mxu0 %v342
        %1040 = vmatprep.subr.mxu0 %v345
        %1041 = vmatpush1.msra.mxu0 %v344
        %1042 = vmatprep.subr.mxu0 %v347
        %1043 = vmatpush1.msra.mxu0 %v346
        %1044 = vmatprep.subr.mxu0 %v349
        %1045 = vmatpush1.msra.mxu0 %v348
        %1046 = vmatprep.subr.mxu0 %v351
        %1047 = vmatpush1.msra.mxu0 %v350
        %1048 = vmatprep.subr.mxu0 0.0
        %1049 = vmatpush1.msra.mxu0 0.0
        %1050 = vmatprep.subr.mxu0 0.0
        %1051 = vmatpush1.msra.mxu0 0.0
        %1052 = vmatprep.subr.mxu0 0.0
        %1053 = vmatpush1.msra.mxu0 0.0
        %1054 = vmatprep.subr.mxu0 0.0
        %1055 = vmatpush1.msra.mxu0 0.0
        %1056 = vmatprep.subr.mxu0 0.0
        %1057 = vmatpush1.msra.mxu0 0.0
        %1058 = vmatprep.subr.mxu0 0.0
        %1059 = vmatpush1.msra.mxu0 0.0
        %1060 = vmatprep.subr.mxu0 0.0
        %1061 = vmatpush1.msra.mxu0 0.0
        %1062 = vmatprep.subr.mxu0 0.0
        %1063 = vmatpush1.msra.mxu0 0.0
        %1064 = vmatprep.subr.mxu0 0.0
        %1065 = vmatpush1.msra.mxu0 0.0
        %1066 = vmatprep.subr.mxu0 0.0
        %1067 = vmatpush1.msra.mxu0 0.0
        %1068 = vmatprep.subr.mxu0 0.0
        %1069 = vmatpush1.msra.mxu0 0.0
        %1070 = vmatprep.subr.mxu0 0.0
        %1071 = vmatpush1.msra.mxu0 0.0
        %1072 = vmatprep.subr.mxu0 0.0
        %1073 = vmatpush1.msra.mxu0 0.0
        %1074 = vmatprep.subr.mxu0 0.0
        %1075 = vmatpush1.msra.mxu0 0.0
        %1076 = vmatprep.subr.mxu0 0.0
        %1077 = vmatpush1.msra.mxu0 0.0
        %1078 = vmatprep.subr.mxu0 0.0
        %1079 = vmatpush1.msra.mxu0 0.0
        %1080 = vmatprep.subr.mxu0 0.0
        %1081 = vmatpush1.msra.mxu0 0.0
        %1082 = vmatprep.subr.mxu0 0.0
        %1083 = vmatpush1.msra.mxu0 0.0
        %1084 = vmatprep.subr.mxu0 0.0
        %1085 = vmatpush1.msra.mxu0 0.0
        %1086 = vmatprep.subr.mxu0 0.0
        %1087 = vmatpush1.msra.mxu0 0.0
        %1088 = vmatprep.subr.mxu0 0.0
        %1089 = vmatpush1.msra.mxu0 0.0
        %1090 = vmatprep.subr.mxu0 0.0
        %1091 = vmatpush1.msra.mxu0 0.0
        %1092 = vmatprep.subr.mxu0 0.0
        %1093 = vmatpush1.msra.mxu0 0.0
        %1094 = vmatprep.subr.mxu0 0.0
        %1095 = vmatpush1.msra.mxu0 0.0
        %1096 = vmatprep.mubr.f32.mxu0 0.0
        %1097 = vmatmul.mubr.f32.gmra.mrb[0].mxu0 %v1030
        %v1098 = vpop.f32.mrb[0].mxu0
        %v1099 = vadd.f32 0.0, %v1098
        %v1100 = vpop.f32.mrb[0].mxu0
        %v1101 = vadd.f32 0.0, %v1100
        %1102 = vdwg.mxu0
        %v1103 = vld [vmem:[#allocation2 + $0x5] ss:$0 sm:$0xff]
        %v1104 = vadd.f32 %v1099, %v1103
        %v1105 = vld [vmem:[#allocation2 + $0xa] ss:$0 sm:$0xff]
        %v1106 = vadd.f32 %v1101, %v1105
        %v1107 = vxor.u32 %v1104, 2147483648
        %v1108 = vmul.f32 %v1107, 1.442695
        %v1109 = vpow.pop %v1108
        %v1110 = vadd.f32 %v1109, 1.0
        %v1111 = vrcp.pop %v1110
        %v1112 = vmul.f32 1.0, %v1111
        %v1113 = vtanh.pop %v1104
        %v1114 = vmul.f32 %v1112, %v989
        %1116 = vrot.lane.b32.xlu0 %v1113, 32
        %v1117 = vpop.permute.xlu0 %1116
        %v1119 = vmul.f32 %v1112, %v1117
        %1121 = vrot.lane.b32.xlu0 %v1119, 32
        %v1122 = vpop.permute.xlu0 %1121
        %v1124 = vadd.f32 %v1114, %v1122
        %v1125 = vtanh.pop %v1124
        %1127 = vrot.lane.b32.xlu0 %v1125, 32
        %v1128 = vpop.permute.xlu0 %1127
        %v1130 = vmul.f32 %v1112, %v1128
        %v1131 = vxor.u32 %v1106, 2147483648
        %v1132 = vmul.f32 %v1131, 1.442695
        %v1133 = vpow.pop %v1132
        %v1134 = vadd.f32 %v1133, 1.0
        %v1135 = vrcp.pop %v1134
        %v1136 = vmul.f32 1.0, %v1135
        %v1137 = vtanh.pop %v1106
        %v1138 = vmul.f32 %v1136, %v1013
        %1140 = vrot.lane.b32.xlu0 %v1137, 32
        %v1141 = vpop.permute.xlu0 %1140
        %v1143 = vmul.f32 %v1136, %v1141
        %1145 = vrot.lane.b32.xlu0 %v1143, 32
        %v1146 = vpop.permute.xlu0 %1145
        %v1148 = vadd.f32 %v1138, %v1146
        %v1149 = vtanh.pop %v1148
        %1151 = vrot.lane.b32.xlu0 %v1149, 32
        %v1152 = vpop.permute.xlu0 %1151
        %v1154 = vmul.f32 %v1136, %v1152
        %1156 = vrot.lane.b32.xlu0 %v1130, 64
        %v1157 = vpop.permute.xlu0 %1156
        %1160 = vrot.lane.b32.xlu0 %v1154, 96
        %v1161 = vpop.permute.xlu0 %1160
        %v1163 = vsel %vm487, %v1157, %v1161
        %v1165 = vsel %vm352, %v1163, 0
        %1167 = vmatprep.subr.mxu0 %v337
        %1168 = vmatpush1.msra.mxu0 %v336
        %1169 = vmatprep.subr.mxu0 %v339
        %1170 = vmatpush1.msra.mxu0 %v338
        %1171 = vmatprep.subr.mxu0 %v341
        %1172 = vmatpush1.msra.mxu0 %v340
        %1173 = vmatprep.subr.mxu0 %v343
        %1174 = vmatpush1.msra.mxu0 %v342
        %1175 = vmatprep.subr.mxu0 %v345
        %1176 = vmatpush1.msra.mxu0 %v344
        %1177 = vmatprep.subr.mxu0 %v347
        %1178 = vmatpush1.msra.mxu0 %v346
        %1179 = vmatprep.subr.mxu0 %v349
        %1180 = vmatpush1.msra.mxu0 %v348
        %1181 = vmatprep.subr.mxu0 %v351
        %1182 = vmatpush1.msra.mxu0 %v350
        %1183 = vmatprep.subr.mxu0 0.0
        %1184 = vmatpush1.msra.mxu0 0.0
        %1185 = vmatprep.subr.mxu0 0.0
        %1186 = vmatpush1.msra.mxu0 0.0
        %1187 = vmatprep.subr.mxu0 0.0
        %1188 = vmatpush1.msra.mxu0 0.0
        %1189 = vmatprep.subr.mxu0 0.0
        %1190 = vmatpush1.msra.mxu0 0.0
        %1191 = vmatprep.subr.mxu0 0.0
        %1192 = vmatpush1.msra.mxu0 0.0
        %1193 = vmatprep.subr.mxu0 0.0
        %1194 = vmatpush1.msra.mxu0 0.0
        %1195 = vmatprep.subr.mxu0 0.0
        %1196 = vmatpush1.msra.mxu0 0.0
        %1197 = vmatprep.subr.mxu0 0.0
        %1198 = vmatpush1.msra.mxu0 0.0
        %1199 = vmatprep.subr.mxu0 0.0
        %1200 = vmatpush1.msra.mxu0 0.0
        %1201 = vmatprep.subr.mxu0 0.0
        %1202 = vmatpush1.msra.mxu0 0.0
        %1203 = vmatprep.subr.mxu0 0.0
        %1204 = vmatpush1.msra.mxu0 0.0
        %1205 = vmatprep.subr.mxu0 0.0
        %1206 = vmatpush1.msra.mxu0 0.0
        %1207 = vmatprep.subr.mxu0 0.0
        %1208 = vmatpush1.msra.mxu0 0.0
        %1209 = vmatprep.subr.mxu0 0.0
        %1210 = vmatpush1.msra.mxu0 0.0
        %1211 = vmatprep.subr.mxu0 0.0
        %1212 = vmatpush1.msra.mxu0 0.0
        %1213 = vmatprep.subr.mxu0 0.0
        %1214 = vmatpush1.msra.mxu0 0.0
        %1215 = vmatprep.subr.mxu0 0.0
        %1216 = vmatpush1.msra.mxu0 0.0
        %1217 = vmatprep.subr.mxu0 0.0
        %1218 = vmatpush1.msra.mxu0 0.0
        %1219 = vmatprep.subr.mxu0 0.0
        %1220 = vmatpush1.msra.mxu0 0.0
        %1221 = vmatprep.subr.mxu0 0.0
        %1222 = vmatpush1.msra.mxu0 0.0
        %1223 = vmatprep.subr.mxu0 0.0
        %1224 = vmatpush1.msra.mxu0 0.0
        %1225 = vmatprep.subr.mxu0 0.0
        %1226 = vmatpush1.msra.mxu0 0.0
        %1227 = vmatprep.subr.mxu0 0.0
        %1228 = vmatpush1.msra.mxu0 0.0
        %1229 = vmatprep.subr.mxu0 0.0
        %1230 = vmatpush1.msra.mxu0 0.0
        %1231 = vmatprep.mubr.f32.mxu0 0.0
        %1232 = vmatmul.mubr.f32.gmra.mrb[0].mxu0 %v1165
        %v1233 = vpop.f32.mrb[0].mxu0
        %v1234 = vadd.f32 0.0, %v1233
        %v1235 = vpop.f32.mrb[0].mxu0
        %v1236 = vadd.f32 0.0, %v1235
        %1237 = vdwg.mxu0
        %v1238 = vld [vmem:[#allocation2 + $0x6] ss:$0 sm:$0xff]
        %v1239 = vadd.f32 %v1234, %v1238
        %v1240 = vld [vmem:[#allocation2 + $0x9] ss:$0 sm:$0xff]
        %v1241 = vadd.f32 %v1236, %v1240
        %v1242 = vxor.u32 %v1239, 2147483648
        %v1243 = vmul.f32 %v1242, 1.442695
        %v1244 = vpow.pop %v1243
        %v1245 = vadd.f32 %v1244, 1.0
        %v1246 = vrcp.pop %v1245
        %v1247 = vmul.f32 1.0, %v1246
        %v1248 = vtanh.pop %v1239
        %v1249 = vmul.f32 %v1247, %v1124
        %1251 = vrot.lane.b32.xlu0 %v1248, 32
        %v1252 = vpop.permute.xlu0 %1251
        %v1254 = vmul.f32 %v1247, %v1252
        %1256 = vrot.lane.b32.xlu0 %v1254, 32
        %v1257 = vpop.permute.xlu0 %1256
        %v1259 = vadd.f32 %v1249, %v1257
        %v1260 = vtanh.pop %v1259
        %1262 = vrot.lane.b32.xlu0 %v1260, 32
        %v1263 = vpop.permute.xlu0 %1262
        %v1265 = vmul.f32 %v1247, %v1263
        %v1266 = vxor.u32 %v1241, 2147483648
        %v1267 = vmul.f32 %v1266, 1.442695
        %v1268 = vpow.pop %v1267
        %v1269 = vadd.f32 %v1268, 1.0
        %v1270 = vrcp.pop %v1269
        %v1271 = vmul.f32 1.0, %v1270
        %v1272 = vtanh.pop %v1241
        %v1273 = vmul.f32 %v1271, %v1148
        %1275 = vrot.lane.b32.xlu0 %v1272, 32
        %v1276 = vpop.permute.xlu0 %1275
        %v1278 = vmul.f32 %v1271, %v1276
        %1280 = vrot.lane.b32.xlu0 %v1278, 32
        %v1281 = vpop.permute.xlu0 %1280
        %v1283 = vadd.f32 %v1273, %v1281
        %v1284 = vtanh.pop %v1283
        %1286 = vrot.lane.b32.xlu0 %v1284, 32
        %v1287 = vpop.permute.xlu0 %1286
        %v1289 = vmul.f32 %v1271, %v1287
        %1291 = vrot.lane.b32.xlu0 %v1265, 64
        %v1292 = vpop.permute.xlu0 %1291
        %1295 = vrot.lane.b32.xlu0 %v1289, 96
        %v1296 = vpop.permute.xlu0 %1295
        %v1298 = vsel %vm487, %v1292, %v1296
        %v1300 = vsel %vm352, %v1298, 0
        %1302 = vmatprep.subr.mxu0 %v337
        %1303 = vmatpush1.msra.mxu0 %v336
        %1304 = vmatprep.subr.mxu0 %v339
        %1305 = vmatpush1.msra.mxu0 %v338
        %1306 = vmatprep.subr.mxu0 %v341
        %1307 = vmatpush1.msra.mxu0 %v340
        %1308 = vmatprep.subr.mxu0 %v343
        %1309 = vmatpush1.msra.mxu0 %v342
        %1310 = vmatprep.subr.mxu0 %v345
        %1311 = vmatpush1.msra.mxu0 %v344
        %1312 = vmatprep.subr.mxu0 %v347
        %1313 = vmatpush1.msra.mxu0 %v346
        %1314 = vmatprep.subr.mxu0 %v349
        %1315 = vmatpush1.msra.mxu0 %v348
        %1316 = vmatprep.subr.mxu0 %v351
        %1317 = vmatpush1.msra.mxu0 %v350
        %1318 = vmatprep.subr.mxu0 0.0
        %1319 = vmatpush1.msra.mxu0 0.0
        %1320 = vmatprep.subr.mxu0 0.0
        %1321 = vmatpush1.msra.mxu0 0.0
        %1322 = vmatprep.subr.mxu0 0.0
        %1323 = vmatpush1.msra.mxu0 0.0
        %1324 = vmatprep.subr.mxu0 0.0
        %1325 = vmatpush1.msra.mxu0 0.0
        %1326 = vmatprep.subr.mxu0 0.0
        %1327 = vmatpush1.msra.mxu0 0.0
        %1328 = vmatprep.subr.mxu0 0.0
        %1329 = vmatpush1.msra.mxu0 0.0
        %1330 = vmatprep.subr.mxu0 0.0
        %1331 = vmatpush1.msra.mxu0 0.0
        %1332 = vmatprep.subr.mxu0 0.0
        %1333 = vmatpush1.msra.mxu0 0.0
        %1334 = vmatprep.subr.mxu0 0.0
        %1335 = vmatpush1.msra.mxu0 0.0
        %1336 = vmatprep.subr.mxu0 0.0
        %1337 = vmatpush1.msra.mxu0 0.0
        %1338 = vmatprep.subr.mxu0 0.0
        %1339 = vmatpush1.msra.mxu0 0.0
        %1340 = vmatprep.subr.mxu0 0.0
        %1341 = vmatpush1.msra.mxu0 0.0
        %1342 = vmatprep.subr.mxu0 0.0
        %1343 = vmatpush1.msra.mxu0 0.0
        %1344 = vmatprep.subr.mxu0 0.0
        %1345 = vmatpush1.msra.mxu0 0.0
        %1346 = vmatprep.subr.mxu0 0.0
        %1347 = vmatpush1.msra.mxu0 0.0
        %1348 = vmatprep.subr.mxu0 0.0
        %1349 = vmatpush1.msra.mxu0 0.0
        %1350 = vmatprep.subr.mxu0 0.0
        %1351 = vmatpush1.msra.mxu0 0.0
        %1352 = vmatprep.subr.mxu0 0.0
        %1353 = vmatpush1.msra.mxu0 0.0
        %1354 = vmatprep.subr.mxu0 0.0
        %1355 = vmatpush1.msra.mxu0 0.0
        %1356 = vmatprep.subr.mxu0 0.0
        %1357 = vmatpush1.msra.mxu0 0.0
        %1358 = vmatprep.subr.mxu0 0.0
        %1359 = vmatpush1.msra.mxu0 0.0
        %1360 = vmatprep.subr.mxu0 0.0
        %1361 = vmatpush1.msra.mxu0 0.0
        %1362 = vmatprep.subr.mxu0 0.0
        %1363 = vmatpush1.msra.mxu0 0.0
        %1364 = vmatprep.subr.mxu0 0.0
        %1365 = vmatpush1.msra.mxu0 0.0
        %1366 = vmatprep.mubr.f32.mxu0 0.0
        %1367 = vmatmul.mubr.f32.gmra.mrb[0].mxu0 %v1300
        %v1368 = vpop.f32.mrb[0].mxu0
        %v1369 = vadd.f32 0.0, %v1368
        %v1370 = vpop.f32.mrb[0].mxu0
        %v1371 = vadd.f32 0.0, %v1370
        %1372 = vdwg.mxu0
        %v1373 = vld [vmem:[#allocation2 + $0x7] ss:$0 sm:$0xff]
        %v1374 = vadd.f32 %v1369, %v1373
        %v1375 = vld [vmem:[#allocation2 + $0x8] ss:$0 sm:$0xff]
        %v1376 = vadd.f32 %v1371, %v1375
        %v1377 = vxor.u32 %v1374, 2147483648
        %v1378 = vmul.f32 %v1377, 1.442695
        %v1379 = vpow.pop %v1378
        %v1380 = vadd.f32 %v1379, 1.0
        %v1381 = vrcp.pop %v1380
        %v1382 = vmul.f32 1.0, %v1381
        %v1383 = vtanh.pop %v1374
        %v1384 = vmul.f32 %v1382, %v1259
        %1386 = vrot.lane.b32.xlu0 %v1383, 32
        %v1387 = vpop.permute.xlu0 %1386
        %v1389 = vmul.f32 %v1382, %v1387
        %1391 = vrot.lane.b32.xlu0 %v1389, 32
        %v1392 = vpop.permute.xlu0 %1391
        %v1394 = vadd.f32 %v1384, %v1392
        %v1395 = vtanh.pop %v1394
        %1397 = vrot.lane.b32.xlu0 %v1395, 32
        %v1398 = vpop.permute.xlu0 %1397
        %v1400 = vmul.f32 %v1382, %v1398
        %v1401 = vxor.u32 %v1376, 2147483648
        %v1402 = vmul.f32 %v1401, 1.442695
        %v1403 = vpow.pop %v1402
        %v1404 = vadd.f32 %v1403, 1.0
        %v1405 = vrcp.pop %v1404
        %v1406 = vmul.f32 1.0, %v1405
        %v1407 = vtanh.pop %v1376
        %v1408 = vmul.f32 %v1406, %v1283
        %1410 = vrot.lane.b32.xlu0 %v1407, 32
        %v1411 = vpop.permute.xlu0 %1410
        %v1413 = vmul.f32 %v1406, %v1411
        %1415 = vrot.lane.b32.xlu0 %v1413, 32
        %v1416 = vpop.permute.xlu0 %1415
        %v1418 = vadd.f32 %v1408, %v1416
        %v1419 = vtanh.pop %v1418
        %1421 = vrot.lane.b32.xlu0 %v1419, 32
        %v1422 = vpop.permute.xlu0 %1421
        %v1424 = vmul.f32 %v1406, %v1422
        %v1425 = vrot.slane %v590, 7
        %v1427 = vrot.slane %v725, 6
        %v1429 = vrot.slane %v860, 5
        %v1431 = vrot.slane %v995, 4
        %v1433 = vrot.slane %v1130, 3
        %v1435 = vrot.slane %v1265, 2
        %v1438 = vrot.slane %v1400, 1
        %vm1440 = vcmask 1040384
        %v1441 = vsel %vm1440, %v454, %v1425
        %vm1442 = vcmask 1041408
        %v1443 = vsel %vm1442, %v1441, %v1427
        %vm1444 = vcmask 1042432
        %v1445 = vsel %vm1444, %v1443, %v1429
        %vm1446 = vcmask 1043456
        %v1447 = vsel %vm1446, %v1445, %v1431
        %vm1448 = vcmask 1044480
        %v1449 = vsel %vm1448, %v1447, %v1433
        %vm1450 = vcmask 1045504
        %v1451 = vsel %vm1450, %v1449, %v1435
        %vm1452 = vcmask 1046528
        %v1453 = vsel %vm1452, %v1451, %v1438
        %v1454 = vrot.slane %v1289, 7
        %v1456 = vrot.slane %v1154, 6
        %v1458 = vrot.slane %v1019, 5
        %v1460 = vrot.slane %v884, 4
        %v1462 = vrot.slane %v749, 3
        %v1464 = vrot.slane %v614, 2
        %v1466 = vrot.slane %v478, 1
        %v1468 = vsel %vm1440, %v1424, %v1454
        %v1469 = vsel %vm1442, %v1468, %v1456
        %v1470 = vsel %vm1444, %v1469, %v1458
        %v1471 = vsel %vm1446, %v1470, %v1460
        %v1472 = vsel %vm1448, %v1471, %v1462
        %v1473 = vsel %vm1450, %v1472, %v1464
        %v1474 = vsel %vm1452, %v1473, %v1466
        %1476 = vrot.lane.b32.xlu0 %v1453, 64
        %v1477 = vpop.permute.xlu0 %1476
        %1480 = vrot.lane.b32.xlu0 %v1474, 96
        %v1481 = vpop.permute.xlu0 %1480
        %v1483 = vsel %vm487, %v1477, %v1481
        %1484 = vst.msk [vmem:[%s241] sm:$0xff] %vm352, %v1483
        %s1485 = sand.u32 %s119, 1
        %s1486 = scalar_lea.sflag [#allocation5], %s1485
        %s1487 = sand.u32 %s119, 1
        %s1488 = smul.addr %s1487, 8
        %s1489 = scalar_lea.vmem [#allocation9], %s1488
        // Predicated region
        $region49: #{tpu_custom_call.1} parent=35 // pred_check
          %p1490 = pneg %p129
        $region50: #{tpu_custom_call.1} parent=35 // pred_check_branch
          %1492 = sbr.rel (%p1490) target = $region52
        $region51: #{tpu_custom_call.1} parent=35 // pred_region
          %s1494 = ssub.s32 128, 128
          %1495 = vsyncadd %s1486, %s1494
          %s1496 = smul.addr %s22, 128
          %s1497 = scalar_lea.hbm %s4, %s1496
          %s1499 = sshll.u32 %s1489, 4
          %s1500 = int_to_ptr.vmem [resolvable:$true] %s1499
          %1502 = dma.vmem_to_hbm [thread:$0]  %s1500, 128, %s1497, %s1486
        $region52: #{tpu_custom_call.1} parent=35 // pred_fallthru
          _
      $region36: #{tpu_custom_call.1} parent=5 // pred_fallthru
        _
      %p1503 = scmp.le.s32.totalorder 2, %s17
      // Predicated region
      $region53: #{tpu_custom_call.1} parent=5 // pred_check
        %p1504 = pneg %p1503
      $region54: #{tpu_custom_call.1} parent=5 // pred_check_branch
        %1506 = sbr.rel (%p1504) target = $region56
      $region55: #{tpu_custom_call.1} parent=5 // pred_region
        %s1507 = ssub.s32 %s17, 2
        // Predicated region
        $region57: #{tpu_custom_call.1} parent=55 // pred_check
          %p1508 = pneg %p135
        $region58: #{tpu_custom_call.1} parent=55 // pred_check_branch
          %1510 = sbr.rel (%p1508) target = $region60
        $region59: #{tpu_custom_call.1} parent=55 // pred_region
          %s1511 = sand.u32 %s120, 1
          %s1512 = scalar_lea.sflag [#allocation5], %s1511
          %s1513 = sand.u32 %s120, 1
          %s1514 = smul.addr %s1513, 8
          %s1515 = scalar_lea.vmem [#allocation9], %s1514
          %1516 = dma.done %s1512, 128
        $region60: #{tpu_custom_call.1} parent=55 // pred_fallthru
          _
      $region56: #{tpu_custom_call.1} parent=5 // pred_fallthru
        _
    $region6: #{tpu_custom_call.1} parent=1 // loop_footer
      %s21 = sadd.s32 1, %s17
    $region7: #{tpu_custom_call.1} parent=1 // loop_footer_branch
      %16 = sbr.rel target = $region3
    $region8: #{tpu_custom_call.1} parent=1 // loop_exit
      _
    %1517 = vsyncpa [#allocation4], 1
    %s1518 = scalar_lea.sflag [#allocation4], 1
    %1519 = vsyncpa %s1518, 1
    %1520 = vsyncpa [#allocation7], 1
    %1521 = vsyncpa [#allocation5], 1
    %s1522 = scalar_lea.sflag [#allocation5], 1
    %1523 = vsyncpa %s1522, 1

</llo_original>
